<compile_context>
chip_gen: v6e
topology: v6e:2x2x1
jax: 0.10.0
libtpu: 0.0.40
codegen_flags: <defaults>
</compile_context>

<pallas_src>
import jax
import jax.numpy as jnp
from jax.experimental import pallas as pl
from jax.experimental.pallas import tpu as pltpu

K = 7
PAD = K // 2
C1 = 0.01 ** 2
C2 = 0.03 ** 2
_LANE = 128


def _ssim_kernel(xp_ref, yp_ref, out_ref):
    # xp_ref / yp_ref: (Hpad, L) stripe of reflection-padded planes packed
    # along lanes (plane b occupies columns [b*Wp, (b+1)*Wp)); rows >= Hp and
    # columns >= TB*Wp are zero padding.  out_ref: (H, L) where column c holds
    # the result for the 7x7 window whose top-left corner is stripe column c;
    # only columns b*Wp + [0, W) are valid, the rest is junk the wrapper drops.
    xp = xp_ref[...]
    yp = yp_ref[...]
    Hpad, L = xp.shape
    H = out_ref.shape[0]
    inv = 1.0 / (K * K)

    # Vertical 7-tap sum as a banded 0/1 matmul on the (otherwise idle) MXU:
    # band[i, j] = 1 iff i <= j <= i+6, so (band @ a)[i, c] = sum_{r=i..i+6} a[r, c].
    rows = jax.lax.broadcasted_iota(jnp.int32, (H, Hpad), 0)
    cols = jax.lax.broadcasted_iota(jnp.int32, (H, Hpad), 1)
    band = jnp.logical_and(cols >= rows, cols <= rows + (K - 1)).astype(jnp.float32)

    def vsum7(a):
        # HIGHEST precision -> fp32 contract on the MXU; the 0/1 band is exact
        # in any dtype, so the result stays within the 1e-4 accuracy budget.
        return jnp.dot(band, a, preferred_element_type=jnp.float32,
                       precision=jax.lax.Precision.HIGHEST)

    def hsum7(a):
        # 7-tap running sum along lanes via a shift-doubling tree of rotates
        # (XLU slot, co-issues with the VPU adds).
        # pltpu.roll(a, L-d, 1)[:, c] == a[:, (c+d) % L]; the wrap-around never
        # reaches a valid output column because every plane carries exactly
        # 2*PAD = 6 trailing guard (pad) columns inside its stripe.
        s2 = a + pltpu.roll(a, L - 1, 1)        # a[c] + a[c+1]
        s4 = s2 + pltpu.roll(s2, L - 2, 1)      # a[c..c+3]
        s6 = s4 + pltpu.roll(s2, L - 4, 1)      # a[c..c+5]
        return s6 + pltpu.roll(a, L - 6, 1)     # a[c..c+6]

    def pool(a):
        # 7x7 mean, stride 1: vertical pass first (shrinks Hpad -> H rows
        # before the lane rolls), then the horizontal pass on (H, L).
        return hsum7(vsum7(a)) * inv

    mu_x = pool(xp)
    mu_y = pool(yp)
    # sigma_x and sigma_y only ever appear as (sigma_x + sigma_y + C2), so
    # x^2 and y^2 share a single pool.
    sigma_sum = pool(xp * xp + yp * yp) - mu_x * mu_x - mu_y * mu_y
    sigma_xy = pool(xp * yp) - mu_x * mu_y

    ssim_n = (2.0 * mu_x * mu_y + C1) * (2.0 * sigma_xy + C2)
    ssim_d = (mu_x * mu_x + mu_y * mu_y + C1) * (sigma_sum + C2)
    out_ref[...] = jnp.clip((1.0 - ssim_n / ssim_d) * 0.5, 0.0, 1.0)


def _vmem_plan():
    """Per-generation VMEM sizing: (block-planning budget, scoped VMEM limit)."""
    try:
        phys = pltpu.get_tpu_info().vmem_capacity_bytes   # 64 MiB/TC on v7x, 128 MiB on v5e/v6e
    except Exception:
        phys = 64 * 1024 * 1024                           # assume the smallest (v7x)
    vmem_limit = min(phys - 24 * 1024 * 1024, 112 * 1024 * 1024)
    vmem_limit = max(vmem_limit, 32 * 1024 * 1024)
    # ~52 MiB budget / 104 MiB limit on v5e/v6e, ~20 MiB / 40 MiB on v7x.
    return vmem_limit // 2, vmem_limit


def _plan_planes_per_step(B, Hp, Wp, budget_bytes):
    """Pick (planes per grid step, #grid steps) under a per-step VMEM budget."""
    # Per-step VMEM ~ double-buffered inputs (4x Hp) + double-buffered output
    # (2x H) + ~6 live f32 temporaries ~= 12 planes' worth.
    per_plane_bytes = 12 * Hp * Wp * 4
    max_tb = max(1, budget_bytes // per_plane_bytes)
    # Prefer >= 2 grid steps so the "parallel" axis shards across both
    # TensorCores on v7x; the extra ~0.35us/step is noise on v5e/v6e.
    if B >= 2:
        max_tb = min(max_tb, (B + 1) // 2)
    tb = max(1, min(B, max_tb))
    steps = -(-B // tb)
    return tb, steps
    # TODO(synk): for single planes larger than the per-step budget, add
    # H-tiling with a 6-row halo (pl.Element / manual DMA); not needed for
    # typical image sizes.


def ssim_pallas(x, y):
    """x, y: (N, C, H, W). Returns the (N, C, H, W) SSIM loss map (float32)."""
    N, C, H, W = x.shape
    if H <= PAD or W <= PAD:
        raise ValueError("ReflectionPad2d(3) requires H > 3 and W > 3")
    B = N * C
    Hp, Wp = H + 2 * PAD, W + 2 * PAD
    # hsum7 relies on each plane carrying exactly K-1 trailing guard columns:
    # the 7-wide window of the last valid output column ends at the plane edge.
    assert Wp - W == K - 1

    x = x.astype(jnp.float32)
    y = y.astype(jnp.float32)

    # Reflection pad (matches nn.ReflectionPad2d(3)).
    pad_cfg = ((0, 0), (0, 0), (PAD, PAD), (PAD, PAD))
    xp = jnp.pad(x, pad_cfg, mode="reflect").reshape(B, Hp, Wp)
    yp = jnp.pad(y, pad_cfg, mode="reflect").reshape(B, Hp, Wp)

    budget_bytes, vmem_limit_bytes = _vmem_plan()
    TB, steps = _plan_planes_per_step(B, Hp, Wp, budget_bytes)
    Bpad = TB * steps
    Hpad = -(-Hp // 8) * 8                 # sublane-align the matmul RHS
    Lt = -(-(TB * Wp) // _LANE) * _LANE    # lane-dense stripe width

    def pack(a):
        # (B, Hp, Wp) -> lane-packed slab (Hpad, steps*Lt).  Stripe s holds
        # planes [s*TB, (s+1)*TB); plane b sits at columns [b*Wp, (b+1)*Wp) of
        # its stripe so the per-plane pad columns double as guard columns.
        a = a.transpose(1, 0, 2).reshape(Hp, B * Wp)
        a = jnp.pad(a, ((0, Hpad - Hp), (0, Bpad * Wp - B * Wp)))
        a = a.reshape(Hpad, steps, TB * Wp)
        a = jnp.pad(a, ((0, 0), (0, 0), (0, Lt - TB * Wp)))
        return a.reshape(Hpad, steps * Lt)
    # TODO(synk): the op is HBM-bound, so the remaining win is removing the
    # wrapper-side pad/transpose copies entirely (reflection-pad inside the
    # kernel from unpadded rows, and a direct 3-D (TB, Hp, Wp) BlockSpec when
    # Wp is already lane-dense).

    xs = pack(xp)
    ys = pack(yp)

    out = pl.pallas_call(
        _ssim_kernel,
        out_shape=jax.ShapeDtypeStruct((H, steps * Lt), jnp.float32),
        grid=(steps,),
        in_specs=[
            pl.BlockSpec((Hpad, Lt), lambda b: (0, b)),
            pl.BlockSpec((Hpad, Lt), lambda b: (0, b)),
        ],
        out_specs=pl.BlockSpec((H, Lt), lambda b: (0, b)),
        compiler_params=pltpu.CompilerParams(
            dimension_semantics=("parallel",),
            vmem_limit_bytes=vmem_limit_bytes,
        ),
    )(xs, ys)

    # Stripe column b*Wp + j is plane (stripe*TB + b), output pixel column j.
    out = out.reshape(H, steps, Lt)[:, :, :TB * Wp]
    out = out.reshape(H, Bpad, Wp)[:, :B, :W]
    return out.transpose(1, 0, 2).reshape(N, C, H, W)


def ssim_reference(x, y):
    """Pure-JAX reference mirroring the PyTorch module (separate pools)."""
    pad_cfg = ((0, 0), (0, 0), (PAD, PAD), (PAD, PAD))
    xp = jnp.pad(x.astype(jnp.float32), pad_cfg, mode="reflect")
    yp = jnp.pad(y.astype(jnp.float32), pad_cfg, mode="reflect")
    N, C, H, W = x.shape

    def pool(a):
        acc = jnp.zeros((N, C, H, W), jnp.float32)
        for di in range(K):
            for dj in range(K):
                acc = acc + a[:, :, di:di + H, dj:dj + W]
        return acc / (K * K)

    mu_x = pool(xp)
    mu_y = pool(yp)
    sigma_x = pool(xp * xp) - mu_x ** 2
    sigma_y = pool(yp * yp) - mu_y ** 2
    sigma_xy = pool(xp * yp) - mu_x * mu_y
    n = (2 * mu_x * mu_y + C1) * (2 * sigma_xy + C2)
    d = (mu_x ** 2 + mu_y ** 2 + C1) * (sigma_x + sigma_y + C2)
    return jnp.clip((1 - n / d) / 2, 0.0, 1.0)


if __name__ == "__main__":
    key = jax.random.PRNGKey(0)
    kx, ky = jax.random.split(key)
    N, C, H, W = 2, 4, 16, 16
    x = jax.random.uniform(kx, (N, C, H, W), dtype=jnp.float32)
    y = jax.random.uniform(ky, (N, C, H, W), dtype=jnp.float32)

    out = jax.block_until_ready(jax.jit(ssim_pallas)(x, y))
    ref = ssim_reference(x, y)

    assert out.shape == (N, C, H, W)
    assert bool(jnp.all(jnp.isfinite(out))), "non-finite output"
    assert jnp.allclose(out, ref, atol=1e-4, rtol=1e-4), "mismatch vs reference"
    print("KERNEL_OK")
</pallas_src>

<mosaic_0001>
module attributes {stable_mosaic.version = 11 : i64} {
  func.func @_ssim_kernel(%arg0: i32, %arg1: memref<24x128xf32, #tpu.memory_space<vmem>>, %arg2: memref<24x128xf32, #tpu.memory_space<vmem>>, %arg3: memref<16x128xf32, #tpu.memory_space<vmem>>) attributes {dimension_semantics = [#tpu.dimension_semantics<parallel>], iteration_bounds = array<i64: 2>, scalar_prefetch = 0 : i64, scratch_operands = 0 : i64, tpu.core_type = #tpu.core_type<tc>, window_params = [{transform_indices = @transform_0, window_bounds = array<i64: 24, 128>}, {transform_indices = @transform_1, window_bounds = array<i64: 24, 128>}, {transform_indices = @transform_2, window_bounds = array<i64: 16, 128>}]} {
    %c0 = arith.constant 0 : index
    %c0_0 = arith.constant 0 : index
    %0 = vector.load %arg1[%c0, %c0_0] : memref<24x128xf32, #tpu.memory_space<vmem>>, vector<24x128xf32>
    %c0_1 = arith.constant 0 : index
    %c0_2 = arith.constant 0 : index
    %1 = vector.load %arg2[%c0_1, %c0_2] : memref<24x128xf32, #tpu.memory_space<vmem>>, vector<24x128xf32>
    %2 = tpu.iota {dimensions = array<i32: 0>} : vector<16x24xi32>
    %3 = tpu.iota {dimensions = array<i32: 1>} : vector<16x24xi32>
    %4 = arith.cmpi sge, %3, %2 : vector<16x24xi32>
    %c6_i32 = arith.constant 6 : i32
    %5 = vector.broadcast %c6_i32 : i32 to vector<16x24xi32>
    %6 = arith.addi %2, %5 : vector<16x24xi32>
    %7 = arith.cmpi sle, %3, %6 : vector<16x24xi32>
    %8 = arith.andi %4, %7 : vector<16x24xi1>
    %9 = arith.extui %8 : vector<16x24xi1> to vector<16x24xi32>
    %10 = arith.sitofp %9 : vector<16x24xi32> to vector<16x24xf32>
    %cst = arith.constant dense<0.000000e+00> : vector<16x128xf32>
    %11 = tpu.matmul %10, %0, %cst {dimension_numbers = #tpu.dot_dimension_numbers<[1], [0], [0], [1], [0, 0, 1, 1], [], []>, precision = #tpu.contract_precision<fp32>} : vector<16x24xf32>, vector<24x128xf32>, vector<16x128xf32> -> vector<16x128xf32>
    %c127_i32 = arith.constant 127 : i32
    %12 = tpu.dynamic_rotate %11 by %c127_i32 dim 1 : vector<16x128xf32>, i32 -> vector<16x128xf32>
    %13 = arith.addf %11, %12 : vector<16x128xf32>
    %c126_i32 = arith.constant 126 : i32
    %14 = tpu.dynamic_rotate %13 by %c126_i32 dim 1 : vector<16x128xf32>, i32 -> vector<16x128xf32>
    %15 = arith.addf %13, %14 : vector<16x128xf32>
    %c124_i32 = arith.constant 124 : i32
    %16 = tpu.dynamic_rotate %13 by %c124_i32 dim 1 : vector<16x128xf32>, i32 -> vector<16x128xf32>
    %17 = arith.addf %15, %16 : vector<16x128xf32>
    %c122_i32 = arith.constant 122 : i32
    %18 = tpu.dynamic_rotate %11 by %c122_i32 dim 1 : vector<16x128xf32>, i32 -> vector<16x128xf32>
    %19 = arith.addf %17, %18 : vector<16x128xf32>
    %cst_3 = arith.constant 0.0204081628 : f32
    %20 = vector.broadcast %cst_3 : f32 to vector<16x128xf32>
    %21 = arith.mulf %19, %20 : vector<16x128xf32>
    %cst_4 = arith.constant dense<0.000000e+00> : vector<16x128xf32>
    %22 = tpu.matmul %10, %1, %cst_4 {dimension_numbers = #tpu.dot_dimension_numbers<[1], [0], [0], [1], [0, 0, 1, 1], [], []>, precision = #tpu.contract_precision<fp32>} : vector<16x24xf32>, vector<24x128xf32>, vector<16x128xf32> -> vector<16x128xf32>
    %c127_i32_5 = arith.constant 127 : i32
    %23 = tpu.dynamic_rotate %22 by %c127_i32_5 dim 1 : vector<16x128xf32>, i32 -> vector<16x128xf32>
    %24 = arith.addf %22, %23 : vector<16x128xf32>
    %c126_i32_6 = arith.constant 126 : i32
    %25 = tpu.dynamic_rotate %24 by %c126_i32_6 dim 1 : vector<16x128xf32>, i32 -> vector<16x128xf32>
    %26 = arith.addf %24, %25 : vector<16x128xf32>
    %c124_i32_7 = arith.constant 124 : i32
    %27 = tpu.dynamic_rotate %24 by %c124_i32_7 dim 1 : vector<16x128xf32>, i32 -> vector<16x128xf32>
    %28 = arith.addf %26, %27 : vector<16x128xf32>
    %c122_i32_8 = arith.constant 122 : i32
    %29 = tpu.dynamic_rotate %22 by %c122_i32_8 dim 1 : vector<16x128xf32>, i32 -> vector<16x128xf32>
    %30 = arith.addf %28, %29 : vector<16x128xf32>
    %cst_9 = arith.constant 0.0204081628 : f32
    %31 = vector.broadcast %cst_9 : f32 to vector<16x128xf32>
    %32 = arith.mulf %30, %31 : vector<16x128xf32>
    %33 = arith.mulf %0, %0 : vector<24x128xf32>
    %34 = arith.mulf %1, %1 : vector<24x128xf32>
    %35 = arith.addf %33, %34 : vector<24x128xf32>
    %cst_10 = arith.constant dense<0.000000e+00> : vector<16x128xf32>
    %36 = tpu.matmul %10, %35, %cst_10 {dimension_numbers = #tpu.dot_dimension_numbers<[1], [0], [0], [1], [0, 0, 1, 1], [], []>, precision = #tpu.contract_precision<fp32>} : vector<16x24xf32>, vector<24x128xf32>, vector<16x128xf32> -> vector<16x128xf32>
    %c127_i32_11 = arith.constant 127 : i32
    %37 = tpu.dynamic_rotate %36 by %c127_i32_11 dim 1 : vector<16x128xf32>, i32 -> vector<16x128xf32>
    %38 = arith.addf %36, %37 : vector<16x128xf32>
    %c126_i32_12 = arith.constant 126 : i32
    %39 = tpu.dynamic_rotate %38 by %c126_i32_12 dim 1 : vector<16x128xf32>, i32 -> vector<16x128xf32>
    %40 = arith.addf %38, %39 : vector<16x128xf32>
    %c124_i32_13 = arith.constant 124 : i32
    %41 = tpu.dynamic_rotate %38 by %c124_i32_13 dim 1 : vector<16x128xf32>, i32 -> vector<16x128xf32>
    %42 = arith.addf %40, %41 : vector<16x128xf32>
    %c122_i32_14 = arith.constant 122 : i32
    %43 = tpu.dynamic_rotate %36 by %c122_i32_14 dim 1 : vector<16x128xf32>, i32 -> vector<16x128xf32>
    %44 = arith.addf %42, %43 : vector<16x128xf32>
    %cst_15 = arith.constant 0.0204081628 : f32
    %45 = vector.broadcast %cst_15 : f32 to vector<16x128xf32>
    %46 = arith.mulf %44, %45 : vector<16x128xf32>
    %47 = arith.mulf %21, %21 : vector<16x128xf32>
    %48 = arith.subf %46, %47 : vector<16x128xf32>
    %49 = arith.mulf %32, %32 : vector<16x128xf32>
    %50 = arith.subf %48, %49 : vector<16x128xf32>
    %51 = arith.mulf %0, %1 : vector<24x128xf32>
    %cst_16 = arith.constant dense<0.000000e+00> : vector<16x128xf32>
    %52 = tpu.matmul %10, %51, %cst_16 {dimension_numbers = #tpu.dot_dimension_numbers<[1], [0], [0], [1], [0, 0, 1, 1], [], []>, precision = #tpu.contract_precision<fp32>} : vector<16x24xf32>, vector<24x128xf32>, vector<16x128xf32> -> vector<16x128xf32>
    %c127_i32_17 = arith.constant 127 : i32
    %53 = tpu.dynamic_rotate %52 by %c127_i32_17 dim 1 : vector<16x128xf32>, i32 -> vector<16x128xf32>
    %54 = arith.addf %52, %53 : vector<16x128xf32>
    %c126_i32_18 = arith.constant 126 : i32
    %55 = tpu.dynamic_rotate %54 by %c126_i32_18 dim 1 : vector<16x128xf32>, i32 -> vector<16x128xf32>
    %56 = arith.addf %54, %55 : vector<16x128xf32>
    %c124_i32_19 = arith.constant 124 : i32
    %57 = tpu.dynamic_rotate %54 by %c124_i32_19 dim 1 : vector<16x128xf32>, i32 -> vector<16x128xf32>
    %58 = arith.addf %56, %57 : vector<16x128xf32>
    %c122_i32_20 = arith.constant 122 : i32
    %59 = tpu.dynamic_rotate %52 by %c122_i32_20 dim 1 : vector<16x128xf32>, i32 -> vector<16x128xf32>
    %60 = arith.addf %58, %59 : vector<16x128xf32>
    %cst_21 = arith.constant 0.0204081628 : f32
    %61 = vector.broadcast %cst_21 : f32 to vector<16x128xf32>
    %62 = arith.mulf %60, %61 : vector<16x128xf32>
    %63 = arith.mulf %21, %32 : vector<16x128xf32>
    %64 = arith.subf %62, %63 : vector<16x128xf32>
    %cst_22 = arith.constant 2.000000e+00 : f32
    %65 = vector.broadcast %cst_22 : f32 to vector<16x128xf32>
    %66 = arith.mulf %65, %21 : vector<16x128xf32>
    %67 = arith.mulf %66, %32 : vector<16x128xf32>
    %cst_23 = arith.constant 9.99999974E-5 : f32
    %68 = vector.broadcast %cst_23 : f32 to vector<16x128xf32>
    %69 = arith.addf %67, %68 : vector<16x128xf32>
    %cst_24 = arith.constant 2.000000e+00 : f32
    %70 = vector.broadcast %cst_24 : f32 to vector<16x128xf32>
    %71 = arith.mulf %70, %64 : vector<16x128xf32>
    %cst_25 = arith.constant 8.99999984E-4 : f32
    %72 = vector.broadcast %cst_25 : f32 to vector<16x128xf32>
    %73 = arith.addf %71, %72 : vector<16x128xf32>
    %74 = arith.mulf %69, %73 : vector<16x128xf32>
    %75 = arith.mulf %21, %21 : vector<16x128xf32>
    %76 = arith.mulf %32, %32 : vector<16x128xf32>
    %77 = arith.addf %75, %76 : vector<16x128xf32>
    %cst_26 = arith.constant 9.99999974E-5 : f32
    %78 = vector.broadcast %cst_26 : f32 to vector<16x128xf32>
    %79 = arith.addf %77, %78 : vector<16x128xf32>
    %cst_27 = arith.constant 8.99999984E-4 : f32
    %80 = vector.broadcast %cst_27 : f32 to vector<16x128xf32>
    %81 = arith.addf %50, %80 : vector<16x128xf32>
    %82 = arith.mulf %79, %81 : vector<16x128xf32>
    %83 = arith.divf %74, %82 : vector<16x128xf32>
    %cst_28 = arith.constant 1.000000e+00 : f32
    %84 = vector.broadcast %cst_28 : f32 to vector<16x128xf32>
    %85 = arith.subf %84, %83 : vector<16x128xf32>
    %cst_29 = arith.constant 5.000000e-01 : f32
    %86 = vector.broadcast %cst_29 : f32 to vector<16x128xf32>
    %87 = arith.mulf %85, %86 : vector<16x128xf32>
    %cst_30 = arith.constant 0.000000e+00 : f32
    %cst_31 = arith.constant 1.000000e+00 : f32
    %88 = vector.broadcast %cst_30 : f32 to vector<16x128xf32>
    %89 = arith.maximumf %88, %87 : vector<16x128xf32>
    %90 = vector.broadcast %cst_31 : f32 to vector<16x128xf32>
    %91 = arith.minimumf %90, %89 : vector<16x128xf32>
    %c0_32 = arith.constant 0 : index
    %c0_33 = arith.constant 0 : index
    %92 = vector.load %arg3[%c0_32, %c0_33] : memref<16x128xf32, #tpu.memory_space<vmem>>, vector<16x128xf32>
    tpu.vector_store %arg3[%c0_32, %c0_33], %91 {strides = array<i32>} : memref<16x128xf32, #tpu.memory_space<vmem>>, vector<16x128xf32>,
    return
  }
  func.func @transform_0(%arg0: i32) -> (i32, i32) {
    %c0_i32 = arith.constant 0 : i32
    %c0_i32_0 = arith.constant 0 : i32
    return %c0_i32, %arg0 : i32, i32
  }
  func.func @transform_1(%arg0: i32) -> (i32, i32) {
    %c0_i32 = arith.constant 0 : i32
    %c0_i32_0 = arith.constant 0 : i32
    return %c0_i32, %arg0 : i32, i32
  }
  func.func @transform_2(%arg0: i32) -> (i32, i32) {
    %c0_i32 = arith.constant 0 : i32
    %c0_i32_0 = arith.constant 0 : i32
    return %c0_i32, %arg0 : i32, i32
  }
}

</mosaic_0001>

<llo_original>
// kernel: ssim_pallas.1
$region0: #{ssim_pallas.1}
  #allocation0 [shape = 'u32[]', space=smem, size = 0x4, offset = 0x4, fixed_abs, tag = 'smem constant byte address 0x4 - core index']
  #allocation1 [shape = 'u32[144,128]{1,0:T(1,128)}', space=vmem, size = 0x12000, scoped, tag = 'internal scratch']
  %s0 = inlined_call_operand.vmem [shape: f32[24,256], index: 0, kind: input, shape index: {}]
  %s1 = inlined_call_operand.vmem [shape: f32[24,256], index: 1, kind: input, shape index: {}]
  %s2 = inlined_call_operand.vmem [shape: f32[16,256], index: 2, kind: output, shape index: {}]
  %s3 = sld [smem:[#allocation0]]
  $region151: #{ssim_pallas.1} parent=0
    _
  %s5 = ssub.s32 1, %s3
  %s6 = scalar_select 0, %s5, %s3
  $region1: #{ssim_pallas.1} parent=0
    #allocation2 [shape = 'u8[24576]{0}', space=vmem, size = 0x6000, scoped, tag = 'input window, operand 0']
    #allocation3 [shape = 'u8[24576]{0}', space=vmem, size = 0x6000, scoped, tag = 'input window, operand 1']
    #allocation4 [shape = 'u8[16384]{0}', space=vmem, size = 0x4000, scoped, tag = 'output window, operand 0']
    loop: start=0, step=1, limit=4
    $region2: #{ssim_pallas.1} parent=1 // loop_pre_header
      _
    $region3: #{ssim_pallas.1} parent=1 // loop_header
      %s8 = sphi 0, %s12
      %p9 = scmp.ge.s32.totalorder %s8, 4
      %s18 = sphi 0, %s20
      %s21 = sphi 0, %s18
      %s22 = sphi 0, %s21
      %s38 = sphi 0, %s22
      %s44 = sphi 0, %s46
      %s47 = sphi 0, %s44
      %s48 = sphi 0, %s47
      %s64 = sphi 0, %s48
      %s70 = sphi 0, %s72
      %s73 = sphi 0, %s70
      %s74 = sphi 0, %s73
      %s90 = sphi 0, %s74
    $region4: #{ssim_pallas.1} parent=1 // loop_header_branch
      %11 = sbr.rel (%p9) target = $region8
    $region5: #{ssim_pallas.1} parent=1 // loop_body
      %s13 = ssub.s32 %s8, 1
      %s14 = ssub.s32 %s8, 2
      %s15 = sadd.s32 %s8, 1
      %s16 = ssub.s32 %s8, %s15
      %p17 = scmp.eq.s32.totalorder %s16, 0
      %s19 = sadd.s32 %s18, 1
      %s20 = scalar_select %p17, %s18, %s19
      %p23 = pneg %p17
      %p24 = scmp.eq.s32.totalorder %s8, 1
      %p25 = por %p23, %p24
      %p26 = scmp.ne.s32.totalorder %s18, %s21
      %p27 = scmp.eq.s32.totalorder %s8, 0
      %p28 = por %p26, %p27
      %p29 = scmp.ne.s32.totalorder %s18, %s21
      %p30 = scmp.eq.s32.totalorder %s13, 1
      %p31 = por %p29, %p30
      %p32 = scmp.ne.s32.totalorder %s21, %s22
      %p33 = scmp.eq.s32.totalorder %s13, 0
      %p34 = por %p32, %p33
      %p35 = scmp.ne.s32.totalorder %s21, %s22
      %p36 = scmp.eq.s32.totalorder %s14, 1
      %p37 = por %p35, %p36
      %p39 = scmp.ne.s32.totalorder %s22, %s38
      %p40 = scmp.eq.s32.totalorder %s14, 0
      %p41 = por %p39, %p40
      %s42 = ssub.s32 %s8, %s15
      %p43 = scmp.eq.s32.totalorder %s42, 0
      %s45 = sadd.s32 %s44, 1
      %s46 = scalar_select %p43, %s44, %s45
      %p49 = pneg %p43
      %p50 = scmp.eq.s32.totalorder %s8, 1
      %p51 = por %p49, %p50
      %p52 = scmp.ne.s32.totalorder %s44, %s47
      %p53 = scmp.eq.s32.totalorder %s8, 0
      %p54 = por %p52, %p53
      %p55 = scmp.ne.s32.totalorder %s44, %s47
      %p56 = scmp.eq.s32.totalorder %s13, 1
      %p57 = por %p55, %p56
      %p58 = scmp.ne.s32.totalorder %s47, %s48
      %p59 = scmp.eq.s32.totalorder %s13, 0
      %p60 = por %p58, %p59
      %p61 = scmp.ne.s32.totalorder %s47, %s48
      %p62 = scmp.eq.s32.totalorder %s14, 1
      %p63 = por %p61, %p62
      %p65 = scmp.ne.s32.totalorder %s48, %s64
      %p66 = scmp.eq.s32.totalorder %s14, 0
      %p67 = por %p65, %p66
      %s68 = ssub.s32 %s8, %s15
      %p69 = scmp.eq.s32.totalorder %s68, 0
      %s71 = sadd.s32 %s70, 1
      %s72 = scalar_select %p69, %s70, %s71
      %p75 = pneg %p69
      %p76 = scmp.eq.s32.totalorder %s8, 1
      %p77 = por %p75, %p76
      %p78 = scmp.ne.s32.totalorder %s70, %s73
      %p79 = scmp.eq.s32.totalorder %s8, 0
      %p80 = por %p78, %p79
      %p81 = scmp.ne.s32.totalorder %s70, %s73
      %p82 = scmp.eq.s32.totalorder %s13, 1
      %p83 = por %p81, %p82
      %p84 = scmp.ne.s32.totalorder %s73, %s74
      %p85 = scmp.eq.s32.totalorder %s13, 0
      %p86 = por %p84, %p85
      %p87 = scmp.ne.s32.totalorder %s73, %s74
      %p88 = scmp.eq.s32.totalorder %s14, 1
      %p89 = por %p87, %p88
      %p91 = scmp.ne.s32.totalorder %s74, %s90
      %p92 = scmp.eq.s32.totalorder %s14, 0
      %p93 = por %p91, %p92
      %p94 = scmp.le.s32.totalorder 1, %s8
      %p95 = scmp.lt.s32.totalorder %s8, 3
      %p96 = pnand %p94, %p95
      %p97 = pneg %p96
      // Predicated region
      $region9: #{ssim_pallas.1} parent=5 // pred_check
        _
      $region10: #{ssim_pallas.1} parent=5 // pred_check_branch
        %99 = sbr.rel (%p96) target = $region12
      $region11: #{ssim_pallas.1} parent=5 // pred_region
        %s100 = ssub.s32 %s8, 1
      $region12: #{ssim_pallas.1} parent=5 // pred_fallthru
        _
      %p101 = scmp.lt.s32.totalorder %s8, 2
      // Predicated region
      $region13: #{ssim_pallas.1} parent=5 // pred_check
        %p102 = pneg %p101
      $region14: #{ssim_pallas.1} parent=5 // pred_check_branch
        %104 = sbr.rel (%p102) target = $region16
      $region15: #{ssim_pallas.1} parent=5 // pred_region
        // Predicated region
        $region17: #{ssim_pallas.1} parent=15 // pred_check
          %p105 = pneg %p28
        $region18: #{ssim_pallas.1} parent=15 // pred_check_branch
          %107 = sbr.rel (%p105) target = $region20
        $region19: #{ssim_pallas.1} parent=15 // pred_region
          %s108 = sand.u32 %s18, 1
          %s109 = sand.u32 %s18, 1
          %s110 = smul.addr %s109, 24
          %s111 = scalar_lea.vmem [#allocation2], %s110
          %s112 = smul.addr %s8, 8
          %s113 = scalar_lea.vmem %s0, %s112
          // Predicated region
          $region21: #{ssim_pallas.1} parent=19 // pred_check
            _
          $region22: #{ssim_pallas.1} parent=19 // pred_check_branch
            %115 = sbr.rel (0) target = $region24
          $region23: #{ssim_pallas.1} parent=19 // pred_region
            // Predicated region
            $region25: #{ssim_pallas.1} parent=23 // pred_check
              _
            $region26: #{ssim_pallas.1} parent=23 // pred_check_branch
              %117 = sbr.rel (0) target = $region28
            $region27: #{ssim_pallas.1} parent=23 // pred_region
              // Predicated region
              $region40: #{ssim_pallas.1} parent=27 // pred_check
                _
              $region41: #{ssim_pallas.1} parent=27 // pred_check_branch
                %137 = sbr.rel (0) target = $region43
              $region42: #{ssim_pallas.1} parent=27 // pred_region
                loop: start=0, step=1, limit=1
                $region44: #{ssim_pallas.1} parent=42 // loop_pre_header
                  _
                $region45: #{ssim_pallas.1} parent=42 // loop_header
                  %s139 = sphi 0, %s143
                  %p140 = scmp.ge.s32.totalorder %s139, 1
                  %s144 = sphi %s113, %s113
                  %s145 = sphi %s111, %s111
                $region46: #{ssim_pallas.1} parent=42 // loop_header_branch
                  %142 = sbr.rel (%p140) target = $region50
                $region47: #{ssim_pallas.1} parent=42 // loop_body
                  %v146 = vld [vmem:[%s144] sm:$0xff]
                  %147 = vst [vmem:[%s145] sm:$0xff] %v146
                  %v148 = vld [vmem:[%s144 + $0x10] sm:$0xff]
                  %149 = vst [vmem:[%s145 + $0x8] sm:$0xff] %v148
                  %v150 = vld [vmem:[%s144 + $0x20] sm:$0xff]
                  %151 = vst [vmem:[%s145 + $0x10] sm:$0xff] %v150
                $region48: #{ssim_pallas.1} parent=42 // loop_footer
                  %s143 = sadd.s32 1, %s139
                $region49: #{ssim_pallas.1} parent=42 // loop_footer_branch
                  %138 = sbr.rel target = $region45
                $region50: #{ssim_pallas.1} parent=42 // loop_exit
                  _
              $region43: #{ssim_pallas.1} parent=27 // pred_fallthru
                _
              // Predicated region
              $region51: #{ssim_pallas.1} parent=27 // pred_check
                _
              $region52: #{ssim_pallas.1} parent=27 // pred_check_branch
                %153 = sbr.rel target = $region54
              $region53: #{ssim_pallas.1} parent=27 // pred_region
                _
              $region54: #{ssim_pallas.1} parent=27 // pred_fallthru
                _
            $region28: #{ssim_pallas.1} parent=23 // pred_fallthru
              _
            // Predicated region
            $region29: #{ssim_pallas.1} parent=23 // pred_check
              _
            $region30: #{ssim_pallas.1} parent=23 // pred_check_branch
              %119 = sbr.rel target = $region32
            $region31: #{ssim_pallas.1} parent=23 // pred_region
              %s121 = ssub.s32 256, 1
              loop: start=0, step=1, limit=1
              $region33: #{ssim_pallas.1} parent=31 // loop_pre_header
                _
              $region34: #{ssim_pallas.1} parent=31 // loop_header
                %s123 = sphi 0, %s127
                %p124 = scmp.ge.s32.totalorder %s123, 1
                %s128 = sphi %s113, %s113
                %s129 = sphi %s111, %s111
              $region35: #{ssim_pallas.1} parent=31 // loop_header_branch
                %126 = sbr.rel (%p124) target = $region39
              $region36: #{ssim_pallas.1} parent=31 // loop_body
                %v130 = vld [vmem:[%s128] sm:%s121]
                %131 = vst [vmem:[%s129] sm:%s121] %v130
                %v132 = vld [vmem:[%s128 + $0x10] sm:%s121]
                %133 = vst [vmem:[%s129 + $0x8] sm:%s121] %v132
                %v134 = vld [vmem:[%s128 + $0x20] sm:%s121]
                %135 = vst [vmem:[%s129 + $0x10] sm:%s121] %v134
              $region37: #{ssim_pallas.1} parent=31 // loop_footer
                %s127 = sadd.s32 1, %s123
              $region38: #{ssim_pallas.1} parent=31 // loop_footer_branch
                %122 = sbr.rel target = $region34
              $region39: #{ssim_pallas.1} parent=31 // loop_exit
                _
            $region32: #{ssim_pallas.1} parent=23 // pred_fallthru
              _
          $region24: #{ssim_pallas.1} parent=19 // pred_fallthru
            _
          %154 = vnop
        $region20: #{ssim_pallas.1} parent=15 // pred_fallthru
          _
        // Predicated region
        $region55: #{ssim_pallas.1} parent=15 // pred_check
          %p155 = pneg %p54
        $region56: #{ssim_pallas.1} parent=15 // pred_check_branch
          %157 = sbr.rel (%p155) target = $region58
        $region57: #{ssim_pallas.1} parent=15 // pred_region
          %s158 = sand.u32 %s44, 1
          %s159 = sand.u32 %s44, 1
          %s160 = smul.addr %s159, 24
          %s161 = scalar_lea.vmem [#allocation3], %s160
          %s162 = smul.addr %s8, 8
          %s163 = scalar_lea.vmem %s1, %s162
          // Predicated region
          $region59: #{ssim_pallas.1} parent=57 // pred_check
            _
          $region60: #{ssim_pallas.1} parent=57 // pred_check_branch
            %165 = sbr.rel (0) target = $region62
          $region61: #{ssim_pallas.1} parent=57 // pred_region
            // Predicated region
            $region63: #{ssim_pallas.1} parent=61 // pred_check
              _
            $region64: #{ssim_pallas.1} parent=61 // pred_check_branch
              %167 = sbr.rel (0) target = $region66
            $region65: #{ssim_pallas.1} parent=61 // pred_region
              // Predicated region
              $region78: #{ssim_pallas.1} parent=65 // pred_check
                _
              $region79: #{ssim_pallas.1} parent=65 // pred_check_branch
                %187 = sbr.rel (0) target = $region81
              $region80: #{ssim_pallas.1} parent=65 // pred_region
                loop: start=0, step=1, limit=1
                $region82: #{ssim_pallas.1} parent=80 // loop_pre_header
                  _
                $region83: #{ssim_pallas.1} parent=80 // loop_header
                  %s189 = sphi 0, %s193
                  %p190 = scmp.ge.s32.totalorder %s189, 1
                  %s194 = sphi %s163, %s163
                  %s195 = sphi %s161, %s161
                $region84: #{ssim_pallas.1} parent=80 // loop_header_branch
                  %192 = sbr.rel (%p190) target = $region88
                $region85: #{ssim_pallas.1} parent=80 // loop_body
                  %v196 = vld [vmem:[%s194] sm:$0xff]
                  %197 = vst [vmem:[%s195] sm:$0xff] %v196
                  %v198 = vld [vmem:[%s194 + $0x10] sm:$0xff]
                  %199 = vst [vmem:[%s195 + $0x8] sm:$0xff] %v198
                  %v200 = vld [vmem:[%s194 + $0x20] sm:$0xff]
                  %201 = vst [vmem:[%s195 + $0x10] sm:$0xff] %v200
                $region86: #{ssim_pallas.1} parent=80 // loop_footer
                  %s193 = sadd.s32 1, %s189
                $region87: #{ssim_pallas.1} parent=80 // loop_footer_branch
                  %188 = sbr.rel target = $region83
                $region88: #{ssim_pallas.1} parent=80 // loop_exit
                  _
              $region81: #{ssim_pallas.1} parent=65 // pred_fallthru
                _
              // Predicated region
              $region89: #{ssim_pallas.1} parent=65 // pred_check
                _
              $region90: #{ssim_pallas.1} parent=65 // pred_check_branch
                %203 = sbr.rel target = $region92
              $region91: #{ssim_pallas.1} parent=65 // pred_region
                _
              $region92: #{ssim_pallas.1} parent=65 // pred_fallthru
                _
            $region66: #{ssim_pallas.1} parent=61 // pred_fallthru
              _
            // Predicated region
            $region67: #{ssim_pallas.1} parent=61 // pred_check
              _
            $region68: #{ssim_pallas.1} parent=61 // pred_check_branch
              %169 = sbr.rel target = $region70
            $region69: #{ssim_pallas.1} parent=61 // pred_region
              %s171 = ssub.s32 256, 1
              loop: start=0, step=1, limit=1
              $region71: #{ssim_pallas.1} parent=69 // loop_pre_header
                _
              $region72: #{ssim_pallas.1} parent=69 // loop_header
                %s173 = sphi 0, %s177
                %p174 = scmp.ge.s32.totalorder %s173, 1
                %s178 = sphi %s163, %s163
                %s179 = sphi %s161, %s161
              $region73: #{ssim_pallas.1} parent=69 // loop_header_branch
                %176 = sbr.rel (%p174) target = $region77
              $region74: #{ssim_pallas.1} parent=69 // loop_body
                %v180 = vld [vmem:[%s178] sm:%s171]
                %181 = vst [vmem:[%s179] sm:%s171] %v180
                %v182 = vld [vmem:[%s178 + $0x10] sm:%s171]
                %183 = vst [vmem:[%s179 + $0x8] sm:%s171] %v182
                %v184 = vld [vmem:[%s178 + $0x20] sm:%s171]
                %185 = vst [vmem:[%s179 + $0x10] sm:%s171] %v184
              $region75: #{ssim_pallas.1} parent=69 // loop_footer
                %s177 = sadd.s32 1, %s173
              $region76: #{ssim_pallas.1} parent=69 // loop_footer_branch
                %172 = sbr.rel target = $region72
              $region77: #{ssim_pallas.1} parent=69 // loop_exit
                _
            $region70: #{ssim_pallas.1} parent=61 // pred_fallthru
              _
          $region62: #{ssim_pallas.1} parent=57 // pred_fallthru
            _
          %204 = vnop
        $region58: #{ssim_pallas.1} parent=15 // pred_fallthru
          _
      $region16: #{ssim_pallas.1} parent=5 // pred_fallthru
        _
      %p205 = scmp.le.s32.totalorder 1, %s8
      %p206 = scmp.lt.s32.totalorder %s8, 3
      %p207 = pnand %p205, %p206
      %p208 = pneg %p207
      // Predicated region
      $region93: #{ssim_pallas.1} parent=5 // pred_check
        _
      $region94: #{ssim_pallas.1} parent=5 // pred_check_branch
        %210 = sbr.rel (%p207) target = $region96
      $region95: #{ssim_pallas.1} parent=5 // pred_region
        %s211 = ssub.s32 %s8, 1
        %s212 = sand.u32 %s21, 1
        %s213 = sand.u32 %s21, 1
        %s214 = smul.addr %s213, 24
        %s215 = scalar_lea.vmem [#allocation2], %s214
        // Predicated region
        $region97: #{ssim_pallas.1} parent=95 // pred_check
          %p216 = pneg %p34
        $region98: #{ssim_pallas.1} parent=95 // pred_check_branch
          %218 = sbr.rel (%p216) target = $region100
        $region99: #{ssim_pallas.1} parent=95 // pred_region
          _
        $region100: #{ssim_pallas.1} parent=95 // pred_fallthru
          _
        %s219 = sand.u32 %s47, 1
        %s220 = sand.u32 %s47, 1
        %s221 = smul.addr %s220, 24
        %s222 = scalar_lea.vmem [#allocation3], %s221
        // Predicated region
        $region101: #{ssim_pallas.1} parent=95 // pred_check
          %p223 = pneg %p60
        $region102: #{ssim_pallas.1} parent=95 // pred_check_branch
          %225 = sbr.rel (%p223) target = $region104
        $region103: #{ssim_pallas.1} parent=95 // pred_region
          _
        $region104: #{ssim_pallas.1} parent=95 // pred_fallthru
          _
        %s226 = sand.u32 %s21, 1
        %s227 = sand.u32 %s21, 1
        %s228 = smul.addr %s227, 24
        %s229 = scalar_lea.vmem [#allocation2], %s228
        %p230 = pneg %p34
        %p231 = pneg %p31
        %s232 = sand.u32 %s47, 1
        %s233 = sand.u32 %s47, 1
        %s234 = smul.addr %s233, 24
        %s235 = scalar_lea.vmem [#allocation3], %s234
        %p236 = pneg %p60
        %p237 = pneg %p57
        %p238 = pneg %p86
        %p239 = pneg %p83
        %s240 = sand.u32 %s73, 1
        %s241 = sand.u32 %s73, 1
        %s242 = smul.addr %s241, 16
        %s243 = scalar_lea.vmem [#allocation4], %s242
        %v244 = vld [vmem:[%s215] sm:$0xff]
        %v245 = vld [vmem:[%s215 + $0x8] sm:$0xff]
        %v246 = vld [vmem:[%s215 + $0x10] sm:$0xff]
        %v247 = vld [vmem:[%s222] sm:$0xff]
        %v248 = vld [vmem:[%s222 + $0x8] sm:$0xff]
        %v249 = vld [vmem:[%s222 + $0x10] sm:$0xff]
        %v250 = vlaneseq
        %v251 = vshrl.u32 %v250, 7
        %v252 = vadd.s32 %v251, 8
        %v253 = vlaneseq
        %v254 = vand.u32 %v253, 127
        %vm255 = vcmp.ge.s32.totalorder %v254, %v251
        %vm256 = vcmp.ge.s32.totalorder %v254, %v252
        %v257 = vadd.s32 %v251, 6
        %v258 = vadd.s32 %v252, 6
        %vm259 = vcmp.le.s32.totalorder %v254, %v257
        %vm260 = vcmp.le.s32.totalorder %v254, %v258
        %vm261 = vmand %vm255, %vm259
        %vm262 = vmand %vm256, %vm260
        %v263 = vsel %vm261, 1, 0
        %v264 = vsel %vm262, 1, 0
        %v265 = vcvt.s32.f32 %v263
        %v266 = vcvt.s32.f32 %v264
        %vm267 = vcmask 195584
        %v269 = vsel %vm267, %v265, 0
        %v272 = vsel %vm267, %v266, 0
        %274 = vmatprep.subr.mxu0 0.0
        %275 = vmatpush1.msra.mxu0 0.0
        %276 = vmatprep.subr.mxu0 0.0
        %277 = vmatpush1.msra.mxu0 0.0
        %278 = vmatprep.subr.mxu0 0.0
        %279 = vmatpush1.msra.mxu0 0.0
        %280 = vmatprep.subr.mxu0 0.0
        %281 = vmatpush1.msra.mxu0 0.0
        %282 = vmatprep.subr.mxu0 0.0
        %283 = vmatpush1.msra.mxu0 0.0
        %284 = vmatprep.subr.mxu0 0.0
        %285 = vmatpush1.msra.mxu0 0.0
        %286 = vmatprep.subr.mxu0 0.0
        %287 = vmatpush1.msra.mxu0 0.0
        %288 = vmatprep.subr.mxu0 0.0
        %289 = vmatpush1.msra.mxu0 0.0
        %290 = vmatprep.subr.mxu0 0.0
        %291 = vmatpush1.msra.mxu0 0.0
        %292 = vmatprep.subr.mxu0 0.0
        %293 = vmatpush1.msra.mxu0 0.0
        %294 = vmatprep.subr.mxu0 0.0
        %295 = vmatpush1.msra.mxu0 0.0
        %296 = vmatprep.subr.mxu0 0.0
        %297 = vmatpush1.msra.mxu0 0.0
        %298 = vmatprep.subr.mxu0 0.0
        %299 = vmatpush1.msra.mxu0 0.0
        %300 = vmatprep.subr.mxu0 0.0
        %v301 = vand.u32 %v246, 4294901760
        %302 = vmatpush1.msra.mxu0 %v301
        %303 = vmatprep.subr.mxu0 0.0
        %v304 = vand.u32 %v245, 4294901760
        %305 = vmatpush1.msra.mxu0 %v304
        %306 = vmatprep.subr.mxu0 0.0
        %v307 = vand.u32 %v244, 4294901760
        %308 = vmatpush1.msra.mxu0 %v307
        %309 = vmatprep.subr.mxu0 0.0
        %310 = vmatpush2.msra.mxu0 0.0
        %311 = vmatprep.subr.mxu0 0.0
        %312 = vmatpush2.msra.mxu0 0.0
        %313 = vmatprep.subr.mxu0 0.0
        %314 = vmatpush2.msra.mxu0 0.0
        %315 = vmatprep.subr.mxu0 0.0
        %316 = vmatpush2.msra.mxu0 0.0
        %317 = vmatprep.subr.mxu0 0.0
        %318 = vmatpush2.msra.mxu0 0.0
        %319 = vmatprep.subr.mxu0 0.0
        %320 = vmatpush2.msra.mxu0 0.0
        %321 = vmatprep.subr.mxu0 0.0
        %322 = vmatpush2.msra.mxu0 0.0
        %323 = vmatprep.subr.mxu0 0.0
        %324 = vmatpush2.msra.mxu0 0.0
        %325 = vmatprep.subr.mxu0 0.0
        %326 = vmatpush2.msra.mxu0 0.0
        %327 = vmatprep.subr.mxu0 0.0
        %328 = vmatpush2.msra.mxu0 0.0
        %329 = vmatprep.subr.mxu0 0.0
        %330 = vmatpush2.msra.mxu0 0.0
        %331 = vmatprep.subr.mxu0 0.0
        %332 = vmatpush2.msra.mxu0 0.0
        %333 = vmatprep.subr.mxu0 0.0
        %334 = vmatpush2.msra.mxu0 0.0
        %335 = vmatprep.subr.mxu0 0.0
        %336 = vmatpush2.msra.mxu0 0.0
        %337 = vmatprep.subr.mxu0 0.0
        %338 = vmatpush2.msra.mxu0 0.0
        %339 = vmatprep.subr.mxu0 0.0
        %340 = vmatpush2.msra.mxu0 0.0
        %341 = vmatprep.mubr.f32.mxu0 0.0
        %v342 = vand.u32 %v269, 4294901760
        %v343 = vsub.f32 %v269, %v342
        %v344 = vand.u32 %v343, 4294901760
        %v345 = vsub.f32 %v343, %v344
        %v346 = vand.u32 %v345, 4294901760
        %347 = vmatmul.mubr.f32.gmra.mxu0 %v346
        %v348 = vpop.f32.mrf.mxu0
        %v349 = vadd.f32 0.0, %v348
        %v350 = vpop.f32.mrf.mxu0
        %351 = vmatprep.mubr.f32.mxu0 0.0
        %v352 = vand.u32 %v272, 4294901760
        %v353 = vsub.f32 %v272, %v352
        %v354 = vand.u32 %v353, 4294901760
        %v355 = vsub.f32 %v353, %v354
        %v356 = vand.u32 %v355, 4294901760
        %357 = vmatmul.mubr.f32.gmra.mxu0 %v356
        %v358 = vpop.f32.mrf.mxu0
        %v359 = vadd.f32 0.0, %v358
        %v360 = vpop.f32.mrf.mxu0
        %361 = vdwg.mxu0
        %362 = vmatprep.subr.mxu0 0.0
        %363 = vmatpush1.msra.mxu0 0.0
        %364 = vmatprep.subr.mxu0 0.0
        %365 = vmatpush1.msra.mxu0 0.0
        %366 = vmatprep.subr.mxu0 0.0
        %367 = vmatpush1.msra.mxu0 0.0
        %368 = vmatprep.subr.mxu0 0.0
        %369 = vmatpush1.msra.mxu0 0.0
        %370 = vmatprep.subr.mxu0 0.0
        %371 = vmatpush1.msra.mxu0 0.0
        %372 = vmatprep.subr.mxu0 0.0
        %373 = vmatpush1.msra.mxu0 0.0
        %374 = vmatprep.subr.mxu0 0.0
        %375 = vmatpush1.msra.mxu0 0.0
        %376 = vmatprep.subr.mxu0 0.0
        %377 = vmatpush1.msra.mxu0 0.0
        %378 = vmatprep.subr.mxu0 0.0
        %379 = vmatpush1.msra.mxu0 0.0
        %380 = vmatprep.subr.mxu0 0.0
        %381 = vmatpush1.msra.mxu0 0.0
        %382 = vmatprep.subr.mxu0 0.0
        %383 = vmatpush1.msra.mxu0 0.0
        %384 = vmatprep.subr.mxu0 0.0
        %385 = vmatpush1.msra.mxu0 0.0
        %386 = vmatprep.subr.mxu0 0.0
        %387 = vmatpush1.msra.mxu0 0.0
        %388 = vmatprep.subr.mxu0 0.0
        %v389 = vand.u32 %v246, 4294901760
        %v390 = vsub.f32 %v246, %v389
        %v391 = vand.u32 %v390, 4294901760
        %v392 = vsub.f32 %v390, %v391
        %v393 = vand.u32 %v392, 4294901760
        %394 = vmatpush1.msra.mxu0 %v393
        %395 = vmatprep.subr.mxu0 0.0
        %v396 = vand.u32 %v245, 4294901760
        %v397 = vsub.f32 %v245, %v396
        %v398 = vand.u32 %v397, 4294901760
        %v399 = vsub.f32 %v397, %v398
        %v400 = vand.u32 %v399, 4294901760
        %401 = vmatpush1.msra.mxu0 %v400
        %402 = vmatprep.subr.mxu0 0.0
        %v403 = vand.u32 %v244, 4294901760
        %v404 = vsub.f32 %v244, %v403
        %v405 = vand.u32 %v404, 4294901760
        %v406 = vsub.f32 %v404, %v405
        %v407 = vand.u32 %v406, 4294901760
        %408 = vmatpush1.msra.mxu0 %v407
        %409 = vmatprep.subr.mxu0 0.0
        %410 = vmatpush2.msra.mxu0 0.0
        %411 = vmatprep.subr.mxu0 0.0
        %412 = vmatpush2.msra.mxu0 0.0
        %413 = vmatprep.subr.mxu0 0.0
        %414 = vmatpush2.msra.mxu0 0.0
        %415 = vmatprep.subr.mxu0 0.0
        %416 = vmatpush2.msra.mxu0 0.0
        %417 = vmatprep.subr.mxu0 0.0
        %418 = vmatpush2.msra.mxu0 0.0
        %419 = vmatprep.subr.mxu0 0.0
        %420 = vmatpush2.msra.mxu0 0.0
        %421 = vmatprep.subr.mxu0 0.0
        %422 = vmatpush2.msra.mxu0 0.0
        %423 = vmatprep.subr.mxu0 0.0
        %424 = vmatpush2.msra.mxu0 0.0
        %425 = vmatprep.subr.mxu0 0.0
        %426 = vmatpush2.msra.mxu0 0.0
        %427 = vmatprep.subr.mxu0 0.0
        %428 = vmatpush2.msra.mxu0 0.0
        %429 = vmatprep.subr.mxu0 0.0
        %430 = vmatpush2.msra.mxu0 0.0
        %431 = vmatprep.subr.mxu0 0.0
        %432 = vmatpush2.msra.mxu0 0.0
        %433 = vmatprep.subr.mxu0 0.0
        %434 = vmatpush2.msra.mxu0 0.0
        %435 = vmatprep.subr.mxu0 0.0
        %436 = vmatpush2.msra.mxu0 0.0
        %437 = vmatprep.subr.mxu0 0.0
        %438 = vmatpush2.msra.mxu0 0.0
        %439 = vmatprep.subr.mxu0 0.0
        %440 = vmatpush2.msra.mxu0 0.0
        %441 = vmatprep.mubr.f32.mxu0 0.0
        %v442 = vand.u32 %v269, 4294901760
        %443 = vmatmul.mubr.f32.gmra.mxu0 %v442
        %v444 = vpop.f32.mrf.mxu0
        %v445 = vadd.f32 %v349, %v444
        %v446 = vpop.f32.mrf.mxu0
        %447 = vmatprep.mubr.f32.mxu0 0.0
        %v448 = vand.u32 %v272, 4294901760
        %449 = vmatmul.mubr.f32.gmra.mxu0 %v448
        %v450 = vpop.f32.mrf.mxu0
        %v451 = vadd.f32 %v359, %v450
        %v452 = vpop.f32.mrf.mxu0
        %453 = vdwg.mxu0
        %454 = vmatprep.subr.mxu0 0.0
        %455 = vmatpush1.msra.mxu0 0.0
        %456 = vmatprep.subr.mxu0 0.0
        %457 = vmatpush1.msra.mxu0 0.0
        %458 = vmatprep.subr.mxu0 0.0
        %459 = vmatpush1.msra.mxu0 0.0
        %460 = vmatprep.subr.mxu0 0.0
        %461 = vmatpush1.msra.mxu0 0.0
        %462 = vmatprep.subr.mxu0 0.0
        %463 = vmatpush1.msra.mxu0 0.0
        %464 = vmatprep.subr.mxu0 0.0
        %465 = vmatpush1.msra.mxu0 0.0
        %466 = vmatprep.subr.mxu0 0.0
        %467 = vmatpush1.msra.mxu0 0.0
        %468 = vmatprep.subr.mxu0 0.0
        %469 = vmatpush1.msra.mxu0 0.0
        %470 = vmatprep.subr.mxu0 0.0
        %471 = vmatpush1.msra.mxu0 0.0
        %472 = vmatprep.subr.mxu0 0.0
        %473 = vmatpush1.msra.mxu0 0.0
        %474 = vmatprep.subr.mxu0 0.0
        %475 = vmatpush1.msra.mxu0 0.0
        %476 = vmatprep.subr.mxu0 0.0
        %477 = vmatpush1.msra.mxu0 0.0
        %478 = vmatprep.subr.mxu0 0.0
        %479 = vmatpush1.msra.mxu0 0.0
        %480 = vmatprep.subr.mxu0 0.0
        %v481 = vand.u32 %v246, 4294901760
        %v482 = vsub.f32 %v246, %v481
        %483 = vmatpush1.msra.mxu0 %v482
        %484 = vmatprep.subr.mxu0 0.0
        %v485 = vand.u32 %v245, 4294901760
        %v486 = vsub.f32 %v245, %v485
        %487 = vmatpush1.msra.mxu0 %v486
        %488 = vmatprep.subr.mxu0 0.0
        %v489 = vand.u32 %v244, 4294901760
        %v490 = vsub.f32 %v244, %v489
        %491 = vmatpush1.msra.mxu0 %v490
        %492 = vmatprep.subr.mxu0 0.0
        %493 = vmatpush2.msra.mxu0 0.0
        %494 = vmatprep.subr.mxu0 0.0
        %495 = vmatpush2.msra.mxu0 0.0
        %496 = vmatprep.subr.mxu0 0.0
        %497 = vmatpush2.msra.mxu0 0.0
        %498 = vmatprep.subr.mxu0 0.0
        %499 = vmatpush2.msra.mxu0 0.0
        %500 = vmatprep.subr.mxu0 0.0
        %501 = vmatpush2.msra.mxu0 0.0
        %502 = vmatprep.subr.mxu0 0.0
        %503 = vmatpush2.msra.mxu0 0.0
        %504 = vmatprep.subr.mxu0 0.0
        %505 = vmatpush2.msra.mxu0 0.0
        %506 = vmatprep.subr.mxu0 0.0
        %507 = vmatpush2.msra.mxu0 0.0
        %508 = vmatprep.subr.mxu0 0.0
        %509 = vmatpush2.msra.mxu0 0.0
        %510 = vmatprep.subr.mxu0 0.0
        %511 = vmatpush2.msra.mxu0 0.0
        %512 = vmatprep.subr.mxu0 0.0
        %513 = vmatpush2.msra.mxu0 0.0
        %514 = vmatprep.subr.mxu0 0.0
        %515 = vmatpush2.msra.mxu0 0.0
        %516 = vmatprep.subr.mxu0 0.0
        %517 = vmatpush2.msra.mxu0 0.0
        %518 = vmatprep.subr.mxu0 0.0
        %519 = vmatpush2.msra.mxu0 0.0
        %520 = vmatprep.subr.mxu0 0.0
        %521 = vmatpush2.msra.mxu0 0.0
        %522 = vmatprep.subr.mxu0 0.0
        %523 = vmatpush2.msra.mxu0 0.0
        %524 = vmatprep.mubr.f32.mxu0 0.0
        %v525 = vand.u32 %v269, 4294901760
        %v526 = vsub.f32 %v269, %v525
        %527 = vmatmul.mubr.f32.gmra.mxu0 %v526
        %v528 = vpop.f32.mrf.mxu0
        %v529 = vadd.f32 %v445, %v528
        %v530 = vpop.f32.mrf.mxu0
        %531 = vmatprep.mubr.f32.mxu0 0.0
        %v532 = vand.u32 %v272, 4294901760
        %v533 = vsub.f32 %v272, %v532
        %534 = vmatmul.mubr.f32.gmra.mxu0 %v533
        %v535 = vpop.f32.mrf.mxu0
        %v536 = vadd.f32 %v451, %v535
        %v537 = vpop.f32.mrf.mxu0
        %538 = vdwg.mxu0
        %539 = vmatprep.subr.mxu0 0.0
        %540 = vmatpush1.msra.mxu0 0.0
        %541 = vmatprep.subr.mxu0 0.0
        %542 = vmatpush1.msra.mxu0 0.0
        %543 = vmatprep.subr.mxu0 0.0
        %544 = vmatpush1.msra.mxu0 0.0
        %545 = vmatprep.subr.mxu0 0.0
        %546 = vmatpush1.msra.mxu0 0.0
        %547 = vmatprep.subr.mxu0 0.0
        %548 = vmatpush1.msra.mxu0 0.0
        %549 = vmatprep.subr.mxu0 0.0
        %550 = vmatpush1.msra.mxu0 0.0
        %551 = vmatprep.subr.mxu0 0.0
        %552 = vmatpush1.msra.mxu0 0.0
        %553 = vmatprep.subr.mxu0 0.0
        %554 = vmatpush1.msra.mxu0 0.0
        %555 = vmatprep.subr.mxu0 0.0
        %556 = vmatpush1.msra.mxu0 0.0
        %557 = vmatprep.subr.mxu0 0.0
        %558 = vmatpush1.msra.mxu0 0.0
        %559 = vmatprep.subr.mxu0 0.0
        %560 = vmatpush1.msra.mxu0 0.0
        %561 = vmatprep.subr.mxu0 0.0
        %562 = vmatpush1.msra.mxu0 0.0
        %563 = vmatprep.subr.mxu0 0.0
        %564 = vmatpush1.msra.mxu0 0.0
        %565 = vmatprep.subr.mxu0 0.0
        %v566 = vand.u32 %v246, 4294901760
        %567 = vmatpush1.msra.mxu0 %v566
        %568 = vmatprep.subr.mxu0 0.0
        %v569 = vand.u32 %v245, 4294901760
        %570 = vmatpush1.msra.mxu0 %v569
        %571 = vmatprep.subr.mxu0 0.0
        %v572 = vand.u32 %v244, 4294901760
        %573 = vmatpush1.msra.mxu0 %v572
        %574 = vmatprep.subr.mxu0 0.0
        %575 = vmatpush2.msra.mxu0 0.0
        %576 = vmatprep.subr.mxu0 0.0
        %577 = vmatpush2.msra.mxu0 0.0
        %578 = vmatprep.subr.mxu0 0.0
        %579 = vmatpush2.msra.mxu0 0.0
        %580 = vmatprep.subr.mxu0 0.0
        %581 = vmatpush2.msra.mxu0 0.0
        %582 = vmatprep.subr.mxu0 0.0
        %583 = vmatpush2.msra.mxu0 0.0
        %584 = vmatprep.subr.mxu0 0.0
        %585 = vmatpush2.msra.mxu0 0.0
        %586 = vmatprep.subr.mxu0 0.0
        %587 = vmatpush2.msra.mxu0 0.0
        %588 = vmatprep.subr.mxu0 0.0
        %589 = vmatpush2.msra.mxu0 0.0
        %590 = vmatprep.subr.mxu0 0.0
        %591 = vmatpush2.msra.mxu0 0.0
        %592 = vmatprep.subr.mxu0 0.0
        %593 = vmatpush2.msra.mxu0 0.0
        %594 = vmatprep.subr.mxu0 0.0
        %595 = vmatpush2.msra.mxu0 0.0
        %596 = vmatprep.subr.mxu0 0.0
        %597 = vmatpush2.msra.mxu0 0.0
        %598 = vmatprep.subr.mxu0 0.0
        %599 = vmatpush2.msra.mxu0 0.0
        %600 = vmatprep.subr.mxu0 0.0
        %601 = vmatpush2.msra.mxu0 0.0
        %602 = vmatprep.subr.mxu0 0.0
        %603 = vmatpush2.msra.mxu0 0.0
        %604 = vmatprep.subr.mxu0 0.0
        %605 = vmatpush2.msra.mxu0 0.0
        %606 = vmatprep.mubr.f32.mxu0 0.0
        %v607 = vand.u32 %v269, 4294901760
        %v608 = vsub.f32 %v269, %v607
        %v609 = vand.u32 %v608, 4294901760
        %610 = vmatmul.mubr.f32.gmra.mxu0 %v609
        %v611 = vpop.f32.mrf.mxu0
        %v612 = vadd.f32 %v529, %v611
        %v613 = vpop.f32.mrf.mxu0
        %614 = vmatprep.mubr.f32.mxu0 0.0
        %v615 = vand.u32 %v272, 4294901760
        %v616 = vsub.f32 %v272, %v615
        %v617 = vand.u32 %v616, 4294901760
        %618 = vmatmul.mubr.f32.gmra.mxu0 %v617
        %v619 = vpop.f32.mrf.mxu0
        %v620 = vadd.f32 %v536, %v619
        %v621 = vpop.f32.mrf.mxu0
        %622 = vdwg.mxu0
        %623 = vmatprep.subr.mxu0 0.0
        %624 = vmatpush1.msra.mxu0 0.0
        %625 = vmatprep.subr.mxu0 0.0
        %626 = vmatpush1.msra.mxu0 0.0
        %627 = vmatprep.subr.mxu0 0.0
        %628 = vmatpush1.msra.mxu0 0.0
        %629 = vmatprep.subr.mxu0 0.0
        %630 = vmatpush1.msra.mxu0 0.0
        %631 = vmatprep.subr.mxu0 0.0
        %632 = vmatpush1.msra.mxu0 0.0
        %633 = vmatprep.subr.mxu0 0.0
        %634 = vmatpush1.msra.mxu0 0.0
        %635 = vmatprep.subr.mxu0 0.0
        %636 = vmatpush1.msra.mxu0 0.0
        %637 = vmatprep.subr.mxu0 0.0
        %638 = vmatpush1.msra.mxu0 0.0
        %639 = vmatprep.subr.mxu0 0.0
        %640 = vmatpush1.msra.mxu0 0.0
        %641 = vmatprep.subr.mxu0 0.0
        %642 = vmatpush1.msra.mxu0 0.0
        %643 = vmatprep.subr.mxu0 0.0
        %644 = vmatpush1.msra.mxu0 0.0
        %645 = vmatprep.subr.mxu0 0.0
        %646 = vmatpush1.msra.mxu0 0.0
        %647 = vmatprep.subr.mxu0 0.0
        %648 = vmatpush1.msra.mxu0 0.0
        %649 = vmatprep.subr.mxu0 0.0
        %v650 = vand.u32 %v246, 4294901760
        %v651 = vsub.f32 %v246, %v650
        %v652 = vand.u32 %v651, 4294901760
        %653 = vmatpush1.msra.mxu0 %v652
        %654 = vmatprep.subr.mxu0 0.0
        %v655 = vand.u32 %v245, 4294901760
        %v656 = vsub.f32 %v245, %v655
        %v657 = vand.u32 %v656, 4294901760
        %658 = vmatpush1.msra.mxu0 %v657
        %659 = vmatprep.subr.mxu0 0.0
        %v660 = vand.u32 %v244, 4294901760
        %v661 = vsub.f32 %v244, %v660
        %v662 = vand.u32 %v661, 4294901760
        %663 = vmatpush1.msra.mxu0 %v662
        %664 = vmatprep.subr.mxu0 0.0
        %665 = vmatpush2.msra.mxu0 0.0
        %666 = vmatprep.subr.mxu0 0.0
        %667 = vmatpush2.msra.mxu0 0.0
        %668 = vmatprep.subr.mxu0 0.0
        %669 = vmatpush2.msra.mxu0 0.0
        %670 = vmatprep.subr.mxu0 0.0
        %671 = vmatpush2.msra.mxu0 0.0
        %672 = vmatprep.subr.mxu0 0.0
        %673 = vmatpush2.msra.mxu0 0.0
        %674 = vmatprep.subr.mxu0 0.0
        %675 = vmatpush2.msra.mxu0 0.0
        %676 = vmatprep.subr.mxu0 0.0
        %677 = vmatpush2.msra.mxu0 0.0
        %678 = vmatprep.subr.mxu0 0.0
        %679 = vmatpush2.msra.mxu0 0.0
        %680 = vmatprep.subr.mxu0 0.0
        %681 = vmatpush2.msra.mxu0 0.0
        %682 = vmatprep.subr.mxu0 0.0
        %683 = vmatpush2.msra.mxu0 0.0
        %684 = vmatprep.subr.mxu0 0.0
        %685 = vmatpush2.msra.mxu0 0.0
        %686 = vmatprep.subr.mxu0 0.0
        %687 = vmatpush2.msra.mxu0 0.0
        %688 = vmatprep.subr.mxu0 0.0
        %689 = vmatpush2.msra.mxu0 0.0
        %690 = vmatprep.subr.mxu0 0.0
        %691 = vmatpush2.msra.mxu0 0.0
        %692 = vmatprep.subr.mxu0 0.0
        %693 = vmatpush2.msra.mxu0 0.0
        %694 = vmatprep.subr.mxu0 0.0
        %695 = vmatpush2.msra.mxu0 0.0
        %696 = vmatprep.mubr.f32.mxu0 0.0
        %v697 = vand.u32 %v269, 4294901760
        %698 = vmatmul.mubr.f32.gmra.mxu0 %v697
        %v699 = vpop.f32.mrf.mxu0
        %v700 = vadd.f32 %v612, %v699
        %v701 = vpop.f32.mrf.mxu0
        %702 = vmatprep.mubr.f32.mxu0 0.0
        %v703 = vand.u32 %v272, 4294901760
        %704 = vmatmul.mubr.f32.gmra.mxu0 %v703
        %v705 = vpop.f32.mrf.mxu0
        %v706 = vadd.f32 %v620, %v705
        %v707 = vpop.f32.mrf.mxu0
        %708 = vdwg.mxu0
        %709 = vmatprep.subr.mxu0 0.0
        %710 = vmatpush1.msra.mxu0 0.0
        %711 = vmatprep.subr.mxu0 0.0
        %712 = vmatpush1.msra.mxu0 0.0
        %713 = vmatprep.subr.mxu0 0.0
        %714 = vmatpush1.msra.mxu0 0.0
        %715 = vmatprep.subr.mxu0 0.0
        %716 = vmatpush1.msra.mxu0 0.0
        %717 = vmatprep.subr.mxu0 0.0
        %718 = vmatpush1.msra.mxu0 0.0
        %719 = vmatprep.subr.mxu0 0.0
        %720 = vmatpush1.msra.mxu0 0.0
        %721 = vmatprep.subr.mxu0 0.0
        %722 = vmatpush1.msra.mxu0 0.0
        %723 = vmatprep.subr.mxu0 0.0
        %724 = vmatpush1.msra.mxu0 0.0
        %725 = vmatprep.subr.mxu0 0.0
        %726 = vmatpush1.msra.mxu0 0.0
        %727 = vmatprep.subr.mxu0 0.0
        %728 = vmatpush1.msra.mxu0 0.0
        %729 = vmatprep.subr.mxu0 0.0
        %730 = vmatpush1.msra.mxu0 0.0
        %731 = vmatprep.subr.mxu0 0.0
        %732 = vmatpush1.msra.mxu0 0.0
        %733 = vmatprep.subr.mxu0 0.0
        %734 = vmatpush1.msra.mxu0 0.0
        %735 = vmatprep.subr.mxu0 0.0
        %v736 = vand.u32 %v246, 4294901760
        %737 = vmatpush1.msra.mxu0 %v736
        %738 = vmatprep.subr.mxu0 0.0
        %v739 = vand.u32 %v245, 4294901760
        %740 = vmatpush1.msra.mxu0 %v739
        %741 = vmatprep.subr.mxu0 0.0
        %v742 = vand.u32 %v244, 4294901760
        %743 = vmatpush1.msra.mxu0 %v742
        %744 = vmatprep.subr.mxu0 0.0
        %745 = vmatpush2.msra.mxu0 0.0
        %746 = vmatprep.subr.mxu0 0.0
        %747 = vmatpush2.msra.mxu0 0.0
        %748 = vmatprep.subr.mxu0 0.0
        %749 = vmatpush2.msra.mxu0 0.0
        %750 = vmatprep.subr.mxu0 0.0
        %751 = vmatpush2.msra.mxu0 0.0
        %752 = vmatprep.subr.mxu0 0.0
        %753 = vmatpush2.msra.mxu0 0.0
        %754 = vmatprep.subr.mxu0 0.0
        %755 = vmatpush2.msra.mxu0 0.0
        %756 = vmatprep.subr.mxu0 0.0
        %757 = vmatpush2.msra.mxu0 0.0
        %758 = vmatprep.subr.mxu0 0.0
        %759 = vmatpush2.msra.mxu0 0.0
        %760 = vmatprep.subr.mxu0 0.0
        %761 = vmatpush2.msra.mxu0 0.0
        %762 = vmatprep.subr.mxu0 0.0
        %763 = vmatpush2.msra.mxu0 0.0
        %764 = vmatprep.subr.mxu0 0.0
        %765 = vmatpush2.msra.mxu0 0.0
        %766 = vmatprep.subr.mxu0 0.0
        %767 = vmatpush2.msra.mxu0 0.0
        %768 = vmatprep.subr.mxu0 0.0
        %769 = vmatpush2.msra.mxu0 0.0
        %770 = vmatprep.subr.mxu0 0.0
        %771 = vmatpush2.msra.mxu0 0.0
        %772 = vmatprep.subr.mxu0 0.0
        %773 = vmatpush2.msra.mxu0 0.0
        %774 = vmatprep.subr.mxu0 0.0
        %775 = vmatpush2.msra.mxu0 0.0
        %776 = vmatprep.mubr.f32.mxu0 0.0
        %v777 = vand.u32 %v269, 4294901760
        %778 = vmatmul.mubr.f32.gmra.mxu0 %v777
        %v779 = vpop.f32.mrf.mxu0
        %v780 = vadd.f32 %v700, %v779
        %v781 = vpop.f32.mrf.mxu0
        %782 = vmatprep.mubr.f32.mxu0 0.0
        %v783 = vand.u32 %v272, 4294901760
        %784 = vmatmul.mubr.f32.gmra.mxu0 %v783
        %v785 = vpop.f32.mrf.mxu0
        %v786 = vadd.f32 %v706, %v785
        %v787 = vpop.f32.mrf.mxu0
        %788 = vdwg.mxu0
        %789 = vrot.lane.b32.xlu0 %v780, 127
        %v790 = vpop.permute.xlu0 %789
        %791 = vrot.lane.b32.xlu0 %v786, 127
        %v792 = vpop.permute.xlu0 %791
        %v793 = vadd.f32 %v780, %v790
        %v794 = vadd.f32 %v786, %v792
        %795 = vrot.lane.b32.xlu0 %v793, 126
        %v796 = vpop.permute.xlu0 %795
        %797 = vrot.lane.b32.xlu0 %v794, 126
        %v798 = vpop.permute.xlu0 %797
        %v799 = vadd.f32 %v793, %v796
        %v800 = vadd.f32 %v794, %v798
        %801 = vrot.lane.b32.xlu0 %v793, 124
        %v802 = vpop.permute.xlu0 %801
        %803 = vrot.lane.b32.xlu0 %v794, 124
        %v804 = vpop.permute.xlu0 %803
        %v805 = vadd.f32 %v799, %v802
        %v806 = vadd.f32 %v800, %v804
        %807 = vrot.lane.b32.xlu0 %v780, 122
        %v808 = vpop.permute.xlu0 %807
        %809 = vrot.lane.b32.xlu0 %v786, 122
        %v810 = vpop.permute.xlu0 %809
        %v811 = vadd.f32 %v805, %v808
        %v812 = vadd.f32 %v806, %v810
        %v813 = vmul.f32 %v811, 0.020408163
        %v814 = vmul.f32 %v812, 0.020408163
        %815 = vmatprep.subr.mxu0 0.0
        %816 = vmatpush1.msra.mxu0 0.0
        %817 = vmatprep.subr.mxu0 0.0
        %818 = vmatpush1.msra.mxu0 0.0
        %819 = vmatprep.subr.mxu0 0.0
        %820 = vmatpush1.msra.mxu0 0.0
        %821 = vmatprep.subr.mxu0 0.0
        %822 = vmatpush1.msra.mxu0 0.0
        %823 = vmatprep.subr.mxu0 0.0
        %824 = vmatpush1.msra.mxu0 0.0
        %825 = vmatprep.subr.mxu0 0.0
        %826 = vmatpush1.msra.mxu0 0.0
        %827 = vmatprep.subr.mxu0 0.0
        %828 = vmatpush1.msra.mxu0 0.0
        %829 = vmatprep.subr.mxu0 0.0
        %830 = vmatpush1.msra.mxu0 0.0
        %831 = vmatprep.subr.mxu0 0.0
        %832 = vmatpush1.msra.mxu0 0.0
        %833 = vmatprep.subr.mxu0 0.0
        %834 = vmatpush1.msra.mxu0 0.0
        %835 = vmatprep.subr.mxu0 0.0
        %836 = vmatpush1.msra.mxu0 0.0
        %837 = vmatprep.subr.mxu0 0.0
        %838 = vmatpush1.msra.mxu0 0.0
        %839 = vmatprep.subr.mxu0 0.0
        %840 = vmatpush1.msra.mxu0 0.0
        %841 = vmatprep.subr.mxu0 0.0
        %v842 = vand.u32 %v249, 4294901760
        %843 = vmatpush1.msra.mxu0 %v842
        %844 = vmatprep.subr.mxu0 0.0
        %v845 = vand.u32 %v248, 4294901760
        %846 = vmatpush1.msra.mxu0 %v845
        %847 = vmatprep.subr.mxu0 0.0
        %v848 = vand.u32 %v247, 4294901760
        %849 = vmatpush1.msra.mxu0 %v848
        %850 = vmatprep.subr.mxu0 0.0
        %851 = vmatpush2.msra.mxu0 0.0
        %852 = vmatprep.subr.mxu0 0.0
        %853 = vmatpush2.msra.mxu0 0.0
        %854 = vmatprep.subr.mxu0 0.0
        %855 = vmatpush2.msra.mxu0 0.0
        %856 = vmatprep.subr.mxu0 0.0
        %857 = vmatpush2.msra.mxu0 0.0
        %858 = vmatprep.subr.mxu0 0.0
        %859 = vmatpush2.msra.mxu0 0.0
        %860 = vmatprep.subr.mxu0 0.0
        %861 = vmatpush2.msra.mxu0 0.0
        %862 = vmatprep.subr.mxu0 0.0
        %863 = vmatpush2.msra.mxu0 0.0
        %864 = vmatprep.subr.mxu0 0.0
        %865 = vmatpush2.msra.mxu0 0.0
        %866 = vmatprep.subr.mxu0 0.0
        %867 = vmatpush2.msra.mxu0 0.0
        %868 = vmatprep.subr.mxu0 0.0
        %869 = vmatpush2.msra.mxu0 0.0
        %870 = vmatprep.subr.mxu0 0.0
        %871 = vmatpush2.msra.mxu0 0.0
        %872 = vmatprep.subr.mxu0 0.0
        %873 = vmatpush2.msra.mxu0 0.0
        %874 = vmatprep.subr.mxu0 0.0
        %875 = vmatpush2.msra.mxu0 0.0
        %876 = vmatprep.subr.mxu0 0.0
        %877 = vmatpush2.msra.mxu0 0.0
        %878 = vmatprep.subr.mxu0 0.0
        %879 = vmatpush2.msra.mxu0 0.0
        %880 = vmatprep.subr.mxu0 0.0
        %881 = vmatpush2.msra.mxu0 0.0
        %882 = vmatprep.mubr.f32.mxu0 0.0
        %v883 = vand.u32 %v269, 4294901760
        %v884 = vsub.f32 %v269, %v883
        %v885 = vand.u32 %v884, 4294901760
        %v886 = vsub.f32 %v884, %v885
        %v887 = vand.u32 %v886, 4294901760
        %888 = vmatmul.mubr.f32.gmra.mxu0 %v887
        %v889 = vpop.f32.mrf.mxu0
        %v890 = vadd.f32 0.0, %v889
        %v891 = vpop.f32.mrf.mxu0
        %892 = vmatprep.mubr.f32.mxu0 0.0
        %v893 = vand.u32 %v272, 4294901760
        %v894 = vsub.f32 %v272, %v893
        %v895 = vand.u32 %v894, 4294901760
        %v896 = vsub.f32 %v894, %v895
        %v897 = vand.u32 %v896, 4294901760
        %898 = vmatmul.mubr.f32.gmra.mxu0 %v897
        %v899 = vpop.f32.mrf.mxu0
        %v900 = vadd.f32 0.0, %v899
        %v901 = vpop.f32.mrf.mxu0
        %902 = vdwg.mxu0
        %903 = vmatprep.subr.mxu0 0.0
        %904 = vmatpush1.msra.mxu0 0.0
        %905 = vmatprep.subr.mxu0 0.0
        %906 = vmatpush1.msra.mxu0 0.0
        %907 = vmatprep.subr.mxu0 0.0
        %908 = vmatpush1.msra.mxu0 0.0
        %909 = vmatprep.subr.mxu0 0.0
        %910 = vmatpush1.msra.mxu0 0.0
        %911 = vmatprep.subr.mxu0 0.0
        %912 = vmatpush1.msra.mxu0 0.0
        %913 = vmatprep.subr.mxu0 0.0
        %914 = vmatpush1.msra.mxu0 0.0
        %915 = vmatprep.subr.mxu0 0.0
        %916 = vmatpush1.msra.mxu0 0.0
        %917 = vmatprep.subr.mxu0 0.0
        %918 = vmatpush1.msra.mxu0 0.0
        %919 = vmatprep.subr.mxu0 0.0
        %920 = vmatpush1.msra.mxu0 0.0
        %921 = vmatprep.subr.mxu0 0.0
        %922 = vmatpush1.msra.mxu0 0.0
        %923 = vmatprep.subr.mxu0 0.0
        %924 = vmatpush1.msra.mxu0 0.0
        %925 = vmatprep.subr.mxu0 0.0
        %926 = vmatpush1.msra.mxu0 0.0
        %927 = vmatprep.subr.mxu0 0.0
        %928 = vmatpush1.msra.mxu0 0.0
        %929 = vmatprep.subr.mxu0 0.0
        %v930 = vand.u32 %v249, 4294901760
        %v931 = vsub.f32 %v249, %v930
        %v932 = vand.u32 %v931, 4294901760
        %v933 = vsub.f32 %v931, %v932
        %v934 = vand.u32 %v933, 4294901760
        %935 = vmatpush1.msra.mxu0 %v934
        %936 = vmatprep.subr.mxu0 0.0
        %v937 = vand.u32 %v248, 4294901760
        %v938 = vsub.f32 %v248, %v937
        %v939 = vand.u32 %v938, 4294901760
        %v940 = vsub.f32 %v938, %v939
        %v941 = vand.u32 %v940, 4294901760
        %942 = vmatpush1.msra.mxu0 %v941
        %943 = vmatprep.subr.mxu0 0.0
        %v944 = vand.u32 %v247, 4294901760
        %v945 = vsub.f32 %v247, %v944
        %v946 = vand.u32 %v945, 4294901760
        %v947 = vsub.f32 %v945, %v946
        %v948 = vand.u32 %v947, 4294901760
        %949 = vmatpush1.msra.mxu0 %v948
        %950 = vmatprep.subr.mxu0 0.0
        %951 = vmatpush2.msra.mxu0 0.0
        %952 = vmatprep.subr.mxu0 0.0
        %953 = vmatpush2.msra.mxu0 0.0
        %954 = vmatprep.subr.mxu0 0.0
        %955 = vmatpush2.msra.mxu0 0.0
        %956 = vmatprep.subr.mxu0 0.0
        %957 = vmatpush2.msra.mxu0 0.0
        %958 = vmatprep.subr.mxu0 0.0
        %959 = vmatpush2.msra.mxu0 0.0
        %960 = vmatprep.subr.mxu0 0.0
        %961 = vmatpush2.msra.mxu0 0.0
        %962 = vmatprep.subr.mxu0 0.0
        %963 = vmatpush2.msra.mxu0 0.0
        %964 = vmatprep.subr.mxu0 0.0
        %965 = vmatpush2.msra.mxu0 0.0
        %966 = vmatprep.subr.mxu0 0.0
        %967 = vmatpush2.msra.mxu0 0.0
        %968 = vmatprep.subr.mxu0 0.0
        %969 = vmatpush2.msra.mxu0 0.0
        %970 = vmatprep.subr.mxu0 0.0
        %971 = vmatpush2.msra.mxu0 0.0
        %972 = vmatprep.subr.mxu0 0.0
        %973 = vmatpush2.msra.mxu0 0.0
        %974 = vmatprep.subr.mxu0 0.0
        %975 = vmatpush2.msra.mxu0 0.0
        %976 = vmatprep.subr.mxu0 0.0
        %977 = vmatpush2.msra.mxu0 0.0
        %978 = vmatprep.subr.mxu0 0.0
        %979 = vmatpush2.msra.mxu0 0.0
        %980 = vmatprep.subr.mxu0 0.0
        %981 = vmatpush2.msra.mxu0 0.0
        %982 = vmatprep.mubr.f32.mxu0 0.0
        %v983 = vand.u32 %v269, 4294901760
        %984 = vmatmul.mubr.f32.gmra.mxu0 %v983
        %v985 = vpop.f32.mrf.mxu0
        %v986 = vadd.f32 %v890, %v985
        %v987 = vpop.f32.mrf.mxu0
        %988 = vmatprep.mubr.f32.mxu0 0.0
        %v989 = vand.u32 %v272, 4294901760
        %990 = vmatmul.mubr.f32.gmra.mxu0 %v989
        %v991 = vpop.f32.mrf.mxu0
        %v992 = vadd.f32 %v900, %v991
        %v993 = vpop.f32.mrf.mxu0
        %994 = vdwg.mxu0
        %995 = vmatprep.subr.mxu0 0.0
        %996 = vmatpush1.msra.mxu0 0.0
        %997 = vmatprep.subr.mxu0 0.0
        %998 = vmatpush1.msra.mxu0 0.0
        %999 = vmatprep.subr.mxu0 0.0
        %1000 = vmatpush1.msra.mxu0 0.0
        %1001 = vmatprep.subr.mxu0 0.0
        %1002 = vmatpush1.msra.mxu0 0.0
        %1003 = vmatprep.subr.mxu0 0.0
        %1004 = vmatpush1.msra.mxu0 0.0
        %1005 = vmatprep.subr.mxu0 0.0
        %1006 = vmatpush1.msra.mxu0 0.0
        %1007 = vmatprep.subr.mxu0 0.0
        %1008 = vmatpush1.msra.mxu0 0.0
        %1009 = vmatprep.subr.mxu0 0.0
        %1010 = vmatpush1.msra.mxu0 0.0
        %1011 = vmatprep.subr.mxu0 0.0
        %1012 = vmatpush1.msra.mxu0 0.0
        %1013 = vmatprep.subr.mxu0 0.0
        %1014 = vmatpush1.msra.mxu0 0.0
        %1015 = vmatprep.subr.mxu0 0.0
        %1016 = vmatpush1.msra.mxu0 0.0
        %1017 = vmatprep.subr.mxu0 0.0
        %1018 = vmatpush1.msra.mxu0 0.0
        %1019 = vmatprep.subr.mxu0 0.0
        %1020 = vmatpush1.msra.mxu0 0.0
        %1021 = vmatprep.subr.mxu0 0.0
        %v1022 = vand.u32 %v249, 4294901760
        %v1023 = vsub.f32 %v249, %v1022
        %1024 = vmatpush1.msra.mxu0 %v1023
        %1025 = vmatprep.subr.mxu0 0.0
        %v1026 = vand.u32 %v248, 4294901760
        %v1027 = vsub.f32 %v248, %v1026
        %1028 = vmatpush1.msra.mxu0 %v1027
        %1029 = vmatprep.subr.mxu0 0.0
        %v1030 = vand.u32 %v247, 4294901760
        %v1031 = vsub.f32 %v247, %v1030
        %1032 = vmatpush1.msra.mxu0 %v1031
        %1033 = vmatprep.subr.mxu0 0.0
        %1034 = vmatpush2.msra.mxu0 0.0
        %1035 = vmatprep.subr.mxu0 0.0
        %1036 = vmatpush2.msra.mxu0 0.0
        %1037 = vmatprep.subr.mxu0 0.0
        %1038 = vmatpush2.msra.mxu0 0.0
        %1039 = vmatprep.subr.mxu0 0.0
        %1040 = vmatpush2.msra.mxu0 0.0
        %1041 = vmatprep.subr.mxu0 0.0
        %1042 = vmatpush2.msra.mxu0 0.0
        %1043 = vmatprep.subr.mxu0 0.0
        %1044 = vmatpush2.msra.mxu0 0.0
        %1045 = vmatprep.subr.mxu0 0.0
        %1046 = vmatpush2.msra.mxu0 0.0
        %1047 = vmatprep.subr.mxu0 0.0
        %1048 = vmatpush2.msra.mxu0 0.0
        %1049 = vmatprep.subr.mxu0 0.0
        %1050 = vmatpush2.msra.mxu0 0.0
        %1051 = vmatprep.subr.mxu0 0.0
        %1052 = vmatpush2.msra.mxu0 0.0
        %1053 = vmatprep.subr.mxu0 0.0
        %1054 = vmatpush2.msra.mxu0 0.0
        %1055 = vmatprep.subr.mxu0 0.0
        %1056 = vmatpush2.msra.mxu0 0.0
        %1057 = vmatprep.subr.mxu0 0.0
        %1058 = vmatpush2.msra.mxu0 0.0
        %1059 = vmatprep.subr.mxu0 0.0
        %1060 = vmatpush2.msra.mxu0 0.0
        %1061 = vmatprep.subr.mxu0 0.0
        %1062 = vmatpush2.msra.mxu0 0.0
        %1063 = vmatprep.subr.mxu0 0.0
        %1064 = vmatpush2.msra.mxu0 0.0
        %1065 = vmatprep.mubr.f32.mxu0 0.0
        %v1066 = vand.u32 %v269, 4294901760
        %v1067 = vsub.f32 %v269, %v1066
        %1068 = vmatmul.mubr.f32.gmra.mxu0 %v1067
        %v1069 = vpop.f32.mrf.mxu0
        %v1070 = vadd.f32 %v986, %v1069
        %v1071 = vpop.f32.mrf.mxu0
        %1072 = vmatprep.mubr.f32.mxu0 0.0
        %v1073 = vand.u32 %v272, 4294901760
        %v1074 = vsub.f32 %v272, %v1073
        %1075 = vmatmul.mubr.f32.gmra.mxu0 %v1074
        %v1076 = vpop.f32.mrf.mxu0
        %v1077 = vadd.f32 %v992, %v1076
        %v1078 = vpop.f32.mrf.mxu0
        %1079 = vdwg.mxu0
        %1080 = vmatprep.subr.mxu0 0.0
        %1081 = vmatpush1.msra.mxu0 0.0
        %1082 = vmatprep.subr.mxu0 0.0
        %1083 = vmatpush1.msra.mxu0 0.0
        %1084 = vmatprep.subr.mxu0 0.0
        %1085 = vmatpush1.msra.mxu0 0.0
        %1086 = vmatprep.subr.mxu0 0.0
        %1087 = vmatpush1.msra.mxu0 0.0
        %1088 = vmatprep.subr.mxu0 0.0
        %1089 = vmatpush1.msra.mxu0 0.0
        %1090 = vmatprep.subr.mxu0 0.0
        %1091 = vmatpush1.msra.mxu0 0.0
        %1092 = vmatprep.subr.mxu0 0.0
        %1093 = vmatpush1.msra.mxu0 0.0
        %1094 = vmatprep.subr.mxu0 0.0
        %1095 = vmatpush1.msra.mxu0 0.0
        %1096 = vmatprep.subr.mxu0 0.0
        %1097 = vmatpush1.msra.mxu0 0.0
        %1098 = vmatprep.subr.mxu0 0.0
        %1099 = vmatpush1.msra.mxu0 0.0
        %1100 = vmatprep.subr.mxu0 0.0
        %1101 = vmatpush1.msra.mxu0 0.0
        %1102 = vmatprep.subr.mxu0 0.0
        %1103 = vmatpush1.msra.mxu0 0.0
        %1104 = vmatprep.subr.mxu0 0.0
        %1105 = vmatpush1.msra.mxu0 0.0
        %1106 = vmatprep.subr.mxu0 0.0
        %v1107 = vand.u32 %v249, 4294901760
        %1108 = vmatpush1.msra.mxu0 %v1107
        %1109 = vmatprep.subr.mxu0 0.0
        %v1110 = vand.u32 %v248, 4294901760
        %1111 = vmatpush1.msra.mxu0 %v1110
        %1112 = vmatprep.subr.mxu0 0.0
        %v1113 = vand.u32 %v247, 4294901760
        %1114 = vmatpush1.msra.mxu0 %v1113
        %1115 = vmatprep.subr.mxu0 0.0
        %1116 = vmatpush2.msra.mxu0 0.0
        %1117 = vmatprep.subr.mxu0 0.0
        %1118 = vmatpush2.msra.mxu0 0.0
        %1119 = vmatprep.subr.mxu0 0.0
        %1120 = vmatpush2.msra.mxu0 0.0
        %1121 = vmatprep.subr.mxu0 0.0
        %1122 = vmatpush2.msra.mxu0 0.0
        %1123 = vmatprep.subr.mxu0 0.0
        %1124 = vmatpush2.msra.mxu0 0.0
        %1125 = vmatprep.subr.mxu0 0.0
        %1126 = vmatpush2.msra.mxu0 0.0
        %1127 = vmatprep.subr.mxu0 0.0
        %1128 = vmatpush2.msra.mxu0 0.0
        %1129 = vmatprep.subr.mxu0 0.0
        %1130 = vmatpush2.msra.mxu0 0.0
        %1131 = vmatprep.subr.mxu0 0.0
        %1132 = vmatpush2.msra.mxu0 0.0
        %1133 = vmatprep.subr.mxu0 0.0
        %1134 = vmatpush2.msra.mxu0 0.0
        %1135 = vmatprep.subr.mxu0 0.0
        %1136 = vmatpush2.msra.mxu0 0.0
        %1137 = vmatprep.subr.mxu0 0.0
        %1138 = vmatpush2.msra.mxu0 0.0
        %1139 = vmatprep.subr.mxu0 0.0
        %1140 = vmatpush2.msra.mxu0 0.0
        %1141 = vmatprep.subr.mxu0 0.0
        %1142 = vmatpush2.msra.mxu0 0.0
        %1143 = vmatprep.subr.mxu0 0.0
        %1144 = vmatpush2.msra.mxu0 0.0
        %1145 = vmatprep.subr.mxu0 0.0
        %1146 = vmatpush2.msra.mxu0 0.0
        %1147 = vmatprep.mubr.f32.mxu0 0.0
        %v1148 = vand.u32 %v269, 4294901760
        %v1149 = vsub.f32 %v269, %v1148
        %v1150 = vand.u32 %v1149, 4294901760
        %1151 = vmatmul.mubr.f32.gmra.mxu0 %v1150
        %v1152 = vpop.f32.mrf.mxu0
        %v1153 = vadd.f32 %v1070, %v1152
        %v1154 = vpop.f32.mrf.mxu0
        %1155 = vmatprep.mubr.f32.mxu0 0.0
        %v1156 = vand.u32 %v272, 4294901760
        %v1157 = vsub.f32 %v272, %v1156
        %v1158 = vand.u32 %v1157, 4294901760
        %1159 = vmatmul.mubr.f32.gmra.mxu0 %v1158
        %v1160 = vpop.f32.mrf.mxu0
        %v1161 = vadd.f32 %v1077, %v1160
        %v1162 = vpop.f32.mrf.mxu0
        %1163 = vdwg.mxu0
        %1164 = vmatprep.subr.mxu0 0.0
        %1165 = vmatpush1.msra.mxu0 0.0
        %1166 = vmatprep.subr.mxu0 0.0
        %1167 = vmatpush1.msra.mxu0 0.0
        %1168 = vmatprep.subr.mxu0 0.0
        %1169 = vmatpush1.msra.mxu0 0.0
        %1170 = vmatprep.subr.mxu0 0.0
        %1171 = vmatpush1.msra.mxu0 0.0
        %1172 = vmatprep.subr.mxu0 0.0
        %1173 = vmatpush1.msra.mxu0 0.0
        %1174 = vmatprep.subr.mxu0 0.0
        %1175 = vmatpush1.msra.mxu0 0.0
        %1176 = vmatprep.subr.mxu0 0.0
        %1177 = vmatpush1.msra.mxu0 0.0
        %1178 = vmatprep.subr.mxu0 0.0
        %1179 = vmatpush1.msra.mxu0 0.0
        %1180 = vmatprep.subr.mxu0 0.0
        %1181 = vmatpush1.msra.mxu0 0.0
        %1182 = vmatprep.subr.mxu0 0.0
        %1183 = vmatpush1.msra.mxu0 0.0
        %1184 = vmatprep.subr.mxu0 0.0
        %1185 = vmatpush1.msra.mxu0 0.0
        %1186 = vmatprep.subr.mxu0 0.0
        %1187 = vmatpush1.msra.mxu0 0.0
        %1188 = vmatprep.subr.mxu0 0.0
        %1189 = vmatpush1.msra.mxu0 0.0
        %1190 = vmatprep.subr.mxu0 0.0
        %v1191 = vand.u32 %v249, 4294901760
        %v1192 = vsub.f32 %v249, %v1191
        %v1193 = vand.u32 %v1192, 4294901760
        %1194 = vmatpush1.msra.mxu0 %v1193
        %1195 = vmatprep.subr.mxu0 0.0
        %v1196 = vand.u32 %v248, 4294901760
        %v1197 = vsub.f32 %v248, %v1196
        %v1198 = vand.u32 %v1197, 4294901760
        %1199 = vmatpush1.msra.mxu0 %v1198
        %1200 = vmatprep.subr.mxu0 0.0
        %v1201 = vand.u32 %v247, 4294901760
        %v1202 = vsub.f32 %v247, %v1201
        %v1203 = vand.u32 %v1202, 4294901760
        %1204 = vmatpush1.msra.mxu0 %v1203
        %1205 = vmatprep.subr.mxu0 0.0
        %1206 = vmatpush2.msra.mxu0 0.0
        %1207 = vmatprep.subr.mxu0 0.0
        %1208 = vmatpush2.msra.mxu0 0.0
        %1209 = vmatprep.subr.mxu0 0.0
        %1210 = vmatpush2.msra.mxu0 0.0
        %1211 = vmatprep.subr.mxu0 0.0
        %1212 = vmatpush2.msra.mxu0 0.0
        %1213 = vmatprep.subr.mxu0 0.0
        %1214 = vmatpush2.msra.mxu0 0.0
        %1215 = vmatprep.subr.mxu0 0.0
        %1216 = vmatpush2.msra.mxu0 0.0
        %1217 = vmatprep.subr.mxu0 0.0
        %1218 = vmatpush2.msra.mxu0 0.0
        %1219 = vmatprep.subr.mxu0 0.0
        %1220 = vmatpush2.msra.mxu0 0.0
        %1221 = vmatprep.subr.mxu0 0.0
        %1222 = vmatpush2.msra.mxu0 0.0
        %1223 = vmatprep.subr.mxu0 0.0
        %1224 = vmatpush2.msra.mxu0 0.0
        %1225 = vmatprep.subr.mxu0 0.0
        %1226 = vmatpush2.msra.mxu0 0.0
        %1227 = vmatprep.subr.mxu0 0.0
        %1228 = vmatpush2.msra.mxu0 0.0
        %1229 = vmatprep.subr.mxu0 0.0
        %1230 = vmatpush2.msra.mxu0 0.0
        %1231 = vmatprep.subr.mxu0 0.0
        %1232 = vmatpush2.msra.mxu0 0.0
        %1233 = vmatprep.subr.mxu0 0.0
        %1234 = vmatpush2.msra.mxu0 0.0
        %1235 = vmatprep.subr.mxu0 0.0
        %1236 = vmatpush2.msra.mxu0 0.0
        %1237 = vmatprep.mubr.f32.mxu0 0.0
        %v1238 = vand.u32 %v269, 4294901760
        %1239 = vmatmul.mubr.f32.gmra.mxu0 %v1238
        %v1240 = vpop.f32.mrf.mxu0
        %v1241 = vadd.f32 %v1153, %v1240
        %v1242 = vpop.f32.mrf.mxu0
        %1243 = vmatprep.mubr.f32.mxu0 0.0
        %v1244 = vand.u32 %v272, 4294901760
        %1245 = vmatmul.mubr.f32.gmra.mxu0 %v1244
        %v1246 = vpop.f32.mrf.mxu0
        %v1247 = vadd.f32 %v1161, %v1246
        %v1248 = vpop.f32.mrf.mxu0
        %1249 = vdwg.mxu0
        %1250 = vmatprep.subr.mxu0 0.0
        %1251 = vmatpush1.msra.mxu0 0.0
        %1252 = vmatprep.subr.mxu0 0.0
        %1253 = vmatpush1.msra.mxu0 0.0
        %1254 = vmatprep.subr.mxu0 0.0
        %1255 = vmatpush1.msra.mxu0 0.0
        %1256 = vmatprep.subr.mxu0 0.0
        %1257 = vmatpush1.msra.mxu0 0.0
        %1258 = vmatprep.subr.mxu0 0.0
        %1259 = vmatpush1.msra.mxu0 0.0
        %1260 = vmatprep.subr.mxu0 0.0
        %1261 = vmatpush1.msra.mxu0 0.0
        %1262 = vmatprep.subr.mxu0 0.0
        %1263 = vmatpush1.msra.mxu0 0.0
        %1264 = vmatprep.subr.mxu0 0.0
        %1265 = vmatpush1.msra.mxu0 0.0
        %1266 = vmatprep.subr.mxu0 0.0
        %1267 = vmatpush1.msra.mxu0 0.0
        %1268 = vmatprep.subr.mxu0 0.0
        %1269 = vmatpush1.msra.mxu0 0.0
        %1270 = vmatprep.subr.mxu0 0.0
        %1271 = vmatpush1.msra.mxu0 0.0
        %1272 = vmatprep.subr.mxu0 0.0
        %1273 = vmatpush1.msra.mxu0 0.0
        %1274 = vmatprep.subr.mxu0 0.0
        %1275 = vmatpush1.msra.mxu0 0.0
        %1276 = vmatprep.subr.mxu0 0.0
        %v1277 = vand.u32 %v249, 4294901760
        %1278 = vmatpush1.msra.mxu0 %v1277
        %1279 = vmatprep.subr.mxu0 0.0
        %v1280 = vand.u32 %v248, 4294901760
        %1281 = vmatpush1.msra.mxu0 %v1280
        %1282 = vmatprep.subr.mxu0 0.0
        %v1283 = vand.u32 %v247, 4294901760
        %1284 = vmatpush1.msra.mxu0 %v1283
        %1285 = vmatprep.subr.mxu0 0.0
        %1286 = vmatpush2.msra.mxu0 0.0
        %1287 = vmatprep.subr.mxu0 0.0
        %1288 = vmatpush2.msra.mxu0 0.0
        %1289 = vmatprep.subr.mxu0 0.0
        %1290 = vmatpush2.msra.mxu0 0.0
        %1291 = vmatprep.subr.mxu0 0.0
        %1292 = vmatpush2.msra.mxu0 0.0
        %1293 = vmatprep.subr.mxu0 0.0
        %1294 = vmatpush2.msra.mxu0 0.0
        %1295 = vmatprep.subr.mxu0 0.0
        %1296 = vmatpush2.msra.mxu0 0.0
        %1297 = vmatprep.subr.mxu0 0.0
        %1298 = vmatpush2.msra.mxu0 0.0
        %1299 = vmatprep.subr.mxu0 0.0
        %1300 = vmatpush2.msra.mxu0 0.0
        %1301 = vmatprep.subr.mxu0 0.0
        %1302 = vmatpush2.msra.mxu0 0.0
        %1303 = vmatprep.subr.mxu0 0.0
        %1304 = vmatpush2.msra.mxu0 0.0
        %1305 = vmatprep.subr.mxu0 0.0
        %1306 = vmatpush2.msra.mxu0 0.0
        %1307 = vmatprep.subr.mxu0 0.0
        %1308 = vmatpush2.msra.mxu0 0.0
        %1309 = vmatprep.subr.mxu0 0.0
        %1310 = vmatpush2.msra.mxu0 0.0
        %1311 = vmatprep.subr.mxu0 0.0
        %1312 = vmatpush2.msra.mxu0 0.0
        %1313 = vmatprep.subr.mxu0 0.0
        %1314 = vmatpush2.msra.mxu0 0.0
        %1315 = vmatprep.subr.mxu0 0.0
        %1316 = vmatpush2.msra.mxu0 0.0
        %1317 = vmatprep.mubr.f32.mxu0 0.0
        %v1318 = vand.u32 %v269, 4294901760
        %1319 = vmatmul.mubr.f32.gmra.mxu0 %v1318
        %v1320 = vpop.f32.mrf.mxu0
        %v1321 = vadd.f32 %v1241, %v1320
        %v1322 = vpop.f32.mrf.mxu0
        %1323 = vmatprep.mubr.f32.mxu0 0.0
        %v1324 = vand.u32 %v272, 4294901760
        %1325 = vmatmul.mubr.f32.gmra.mxu0 %v1324
        %v1326 = vpop.f32.mrf.mxu0
        %v1327 = vadd.f32 %v1247, %v1326
        %v1328 = vpop.f32.mrf.mxu0
        %1329 = vdwg.mxu0
        %1330 = vrot.lane.b32.xlu0 %v1321, 127
        %v1331 = vpop.permute.xlu0 %1330
        %1332 = vrot.lane.b32.xlu0 %v1327, 127
        %v1333 = vpop.permute.xlu0 %1332
        %v1334 = vadd.f32 %v1321, %v1331
        %v1335 = vadd.f32 %v1327, %v1333
        %1336 = vrot.lane.b32.xlu0 %v1334, 126
        %v1337 = vpop.permute.xlu0 %1336
        %1338 = vrot.lane.b32.xlu0 %v1335, 126
        %v1339 = vpop.permute.xlu0 %1338
        %v1340 = vadd.f32 %v1334, %v1337
        %v1341 = vadd.f32 %v1335, %v1339
        %1342 = vrot.lane.b32.xlu0 %v1334, 124
        %v1343 = vpop.permute.xlu0 %1342
        %1344 = vrot.lane.b32.xlu0 %v1335, 124
        %v1345 = vpop.permute.xlu0 %1344
        %v1346 = vadd.f32 %v1340, %v1343
        %v1347 = vadd.f32 %v1341, %v1345
        %1348 = vrot.lane.b32.xlu0 %v1321, 122
        %v1349 = vpop.permute.xlu0 %1348
        %1350 = vrot.lane.b32.xlu0 %v1327, 122
        %v1351 = vpop.permute.xlu0 %1350
        %v1352 = vadd.f32 %v1346, %v1349
        %v1353 = vadd.f32 %v1347, %v1351
        %v1354 = vmul.f32 %v1352, 0.020408163
        %v1355 = vmul.f32 %v1353, 0.020408163
        %v1356 = vmul.f32 %v244, %v244
        %v1357 = vmul.f32 %v245, %v245
        %v1358 = vmul.f32 %v246, %v246
        %v1359 = vmul.f32 %v247, %v247
        %v1360 = vmul.f32 %v248, %v248
        %v1361 = vmul.f32 %v249, %v249
        %v1362 = vadd.f32 %v1356, %v1359
        %v1363 = vadd.f32 %v1357, %v1360
        %v1364 = vadd.f32 %v1358, %v1361
        %1365 = vmatprep.subr.mxu0 0.0
        %1366 = vmatpush1.msra.mxu0 0.0
        %1367 = vmatprep.subr.mxu0 0.0
        %1368 = vmatpush1.msra.mxu0 0.0
        %1369 = vmatprep.subr.mxu0 0.0
        %1370 = vmatpush1.msra.mxu0 0.0
        %1371 = vmatprep.subr.mxu0 0.0
        %1372 = vmatpush1.msra.mxu0 0.0
        %1373 = vmatprep.subr.mxu0 0.0
        %1374 = vmatpush1.msra.mxu0 0.0
        %1375 = vmatprep.subr.mxu0 0.0
        %1376 = vmatpush1.msra.mxu0 0.0
        %1377 = vmatprep.subr.mxu0 0.0
        %1378 = vmatpush1.msra.mxu0 0.0
        %1379 = vmatprep.subr.mxu0 0.0
        %1380 = vmatpush1.msra.mxu0 0.0
        %1381 = vmatprep.subr.mxu0 0.0
        %1382 = vmatpush1.msra.mxu0 0.0
        %1383 = vmatprep.subr.mxu0 0.0
        %1384 = vmatpush1.msra.mxu0 0.0
        %1385 = vmatprep.subr.mxu0 0.0
        %1386 = vmatpush1.msra.mxu0 0.0
        %1387 = vmatprep.subr.mxu0 0.0
        %1388 = vmatpush1.msra.mxu0 0.0
        %1389 = vmatprep.subr.mxu0 0.0
        %1390 = vmatpush1.msra.mxu0 0.0
        %1391 = vmatprep.subr.mxu0 0.0
        %v1392 = vand.u32 %v1364, 4294901760
        %1393 = vmatpush1.msra.mxu0 %v1392
        %1394 = vmatprep.subr.mxu0 0.0
        %v1395 = vand.u32 %v1363, 4294901760
        %1396 = vmatpush1.msra.mxu0 %v1395
        %1397 = vmatprep.subr.mxu0 0.0
        %v1398 = vand.u32 %v1362, 4294901760
        %1399 = vmatpush1.msra.mxu0 %v1398
        %1400 = vmatprep.subr.mxu0 0.0
        %1401 = vmatpush2.msra.mxu0 0.0
        %1402 = vmatprep.subr.mxu0 0.0
        %1403 = vmatpush2.msra.mxu0 0.0
        %1404 = vmatprep.subr.mxu0 0.0
        %1405 = vmatpush2.msra.mxu0 0.0
        %1406 = vmatprep.subr.mxu0 0.0
        %1407 = vmatpush2.msra.mxu0 0.0
        %1408 = vmatprep.subr.mxu0 0.0
        %1409 = vmatpush2.msra.mxu0 0.0
        %1410 = vmatprep.subr.mxu0 0.0
        %1411 = vmatpush2.msra.mxu0 0.0
        %1412 = vmatprep.subr.mxu0 0.0
        %1413 = vmatpush2.msra.mxu0 0.0
        %1414 = vmatprep.subr.mxu0 0.0
        %1415 = vmatpush2.msra.mxu0 0.0
        %1416 = vmatprep.subr.mxu0 0.0
        %1417 = vmatpush2.msra.mxu0 0.0
        %1418 = vmatprep.subr.mxu0 0.0
        %1419 = vmatpush2.msra.mxu0 0.0
        %1420 = vmatprep.subr.mxu0 0.0
        %1421 = vmatpush2.msra.mxu0 0.0
        %1422 = vmatprep.subr.mxu0 0.0
        %1423 = vmatpush2.msra.mxu0 0.0
        %1424 = vmatprep.subr.mxu0 0.0
        %1425 = vmatpush2.msra.mxu0 0.0
        %1426 = vmatprep.subr.mxu0 0.0
        %1427 = vmatpush2.msra.mxu0 0.0
        %1428 = vmatprep.subr.mxu0 0.0
        %1429 = vmatpush2.msra.mxu0 0.0
        %1430 = vmatprep.subr.mxu0 0.0
        %1431 = vmatpush2.msra.mxu0 0.0
        %1432 = vmatprep.mubr.f32.mxu0 0.0
        %v1433 = vand.u32 %v269, 4294901760
        %v1434 = vsub.f32 %v269, %v1433
        %v1435 = vand.u32 %v1434, 4294901760
        %v1436 = vsub.f32 %v1434, %v1435
        %v1437 = vand.u32 %v1436, 4294901760
        %1438 = vmatmul.mubr.f32.gmra.mxu0 %v1437
        %v1439 = vpop.f32.mrf.mxu0
        %v1440 = vadd.f32 0.0, %v1439
        %v1441 = vpop.f32.mrf.mxu0
        %1442 = vmatprep.mubr.f32.mxu0 0.0
        %v1443 = vand.u32 %v272, 4294901760
        %v1444 = vsub.f32 %v272, %v1443
        %v1445 = vand.u32 %v1444, 4294901760
        %v1446 = vsub.f32 %v1444, %v1445
        %v1447 = vand.u32 %v1446, 4294901760
        %1448 = vmatmul.mubr.f32.gmra.mxu0 %v1447
        %v1449 = vpop.f32.mrf.mxu0
        %v1450 = vadd.f32 0.0, %v1449
        %v1451 = vpop.f32.mrf.mxu0
        %1452 = vdwg.mxu0
        %1453 = vmatprep.subr.mxu0 0.0
        %1454 = vmatpush1.msra.mxu0 0.0
        %1455 = vmatprep.subr.mxu0 0.0
        %1456 = vmatpush1.msra.mxu0 0.0
        %1457 = vmatprep.subr.mxu0 0.0
        %1458 = vmatpush1.msra.mxu0 0.0
        %1459 = vmatprep.subr.mxu0 0.0
        %1460 = vmatpush1.msra.mxu0 0.0
        %1461 = vmatprep.subr.mxu0 0.0
        %1462 = vmatpush1.msra.mxu0 0.0
        %1463 = vmatprep.subr.mxu0 0.0
        %1464 = vmatpush1.msra.mxu0 0.0
        %1465 = vmatprep.subr.mxu0 0.0
        %1466 = vmatpush1.msra.mxu0 0.0
        %1467 = vmatprep.subr.mxu0 0.0
        %1468 = vmatpush1.msra.mxu0 0.0
        %1469 = vmatprep.subr.mxu0 0.0
        %1470 = vmatpush1.msra.mxu0 0.0
        %1471 = vmatprep.subr.mxu0 0.0
        %1472 = vmatpush1.msra.mxu0 0.0
        %1473 = vmatprep.subr.mxu0 0.0
        %1474 = vmatpush1.msra.mxu0 0.0
        %1475 = vmatprep.subr.mxu0 0.0
        %1476 = vmatpush1.msra.mxu0 0.0
        %1477 = vmatprep.subr.mxu0 0.0
        %1478 = vmatpush1.msra.mxu0 0.0
        %1479 = vmatprep.subr.mxu0 0.0
        %v1480 = vand.u32 %v1364, 4294901760
        %v1481 = vsub.f32 %v1364, %v1480
        %v1482 = vand.u32 %v1481, 4294901760
        %v1483 = vsub.f32 %v1481, %v1482
        %v1484 = vand.u32 %v1483, 4294901760
        %1485 = vmatpush1.msra.mxu0 %v1484
        %1486 = vmatprep.subr.mxu0 0.0
        %v1487 = vand.u32 %v1363, 4294901760
        %v1488 = vsub.f32 %v1363, %v1487
        %v1489 = vand.u32 %v1488, 4294901760
        %v1490 = vsub.f32 %v1488, %v1489
        %v1491 = vand.u32 %v1490, 4294901760
        %1492 = vmatpush1.msra.mxu0 %v1491
        %1493 = vmatprep.subr.mxu0 0.0
        %v1494 = vand.u32 %v1362, 4294901760
        %v1495 = vsub.f32 %v1362, %v1494
        %v1496 = vand.u32 %v1495, 4294901760
        %v1497 = vsub.f32 %v1495, %v1496
        %v1498 = vand.u32 %v1497, 4294901760
        %1499 = vmatpush1.msra.mxu0 %v1498
        %1500 = vmatprep.subr.mxu0 0.0
        %1501 = vmatpush2.msra.mxu0 0.0
        %1502 = vmatprep.subr.mxu0 0.0
        %1503 = vmatpush2.msra.mxu0 0.0
        %1504 = vmatprep.subr.mxu0 0.0
        %1505 = vmatpush2.msra.mxu0 0.0
        %1506 = vmatprep.subr.mxu0 0.0
        %1507 = vmatpush2.msra.mxu0 0.0
        %1508 = vmatprep.subr.mxu0 0.0
        %1509 = vmatpush2.msra.mxu0 0.0
        %1510 = vmatprep.subr.mxu0 0.0
        %1511 = vmatpush2.msra.mxu0 0.0
        %1512 = vmatprep.subr.mxu0 0.0
        %1513 = vmatpush2.msra.mxu0 0.0
        %1514 = vmatprep.subr.mxu0 0.0
        %1515 = vmatpush2.msra.mxu0 0.0
        %1516 = vmatprep.subr.mxu0 0.0
        %1517 = vmatpush2.msra.mxu0 0.0
        %1518 = vmatprep.subr.mxu0 0.0
        %1519 = vmatpush2.msra.mxu0 0.0
        %1520 = vmatprep.subr.mxu0 0.0
        %1521 = vmatpush2.msra.mxu0 0.0
        %1522 = vmatprep.subr.mxu0 0.0
        %1523 = vmatpush2.msra.mxu0 0.0
        %1524 = vmatprep.subr.mxu0 0.0
        %1525 = vmatpush2.msra.mxu0 0.0
        %1526 = vmatprep.subr.mxu0 0.0
        %1527 = vmatpush2.msra.mxu0 0.0
        %1528 = vmatprep.subr.mxu0 0.0
        %1529 = vmatpush2.msra.mxu0 0.0
        %1530 = vmatprep.subr.mxu0 0.0
        %1531 = vmatpush2.msra.mxu0 0.0
        %1532 = vmatprep.mubr.f32.mxu0 0.0
        %v1533 = vand.u32 %v269, 4294901760
        %1534 = vmatmul.mubr.f32.gmra.mxu0 %v1533
        %v1535 = vpop.f32.mrf.mxu0
        %v1536 = vadd.f32 %v1440, %v1535
        %v1537 = vpop.f32.mrf.mxu0
        %1538 = vmatprep.mubr.f32.mxu0 0.0
        %v1539 = vand.u32 %v272, 4294901760
        %1540 = vmatmul.mubr.f32.gmra.mxu0 %v1539
        %v1541 = vpop.f32.mrf.mxu0
        %v1542 = vadd.f32 %v1450, %v1541
        %v1543 = vpop.f32.mrf.mxu0
        %1544 = vdwg.mxu0
        %1545 = vmatprep.subr.mxu0 0.0
        %1546 = vmatpush1.msra.mxu0 0.0
        %1547 = vmatprep.subr.mxu0 0.0
        %1548 = vmatpush1.msra.mxu0 0.0
        %1549 = vmatprep.subr.mxu0 0.0
        %1550 = vmatpush1.msra.mxu0 0.0
        %1551 = vmatprep.subr.mxu0 0.0
        %1552 = vmatpush1.msra.mxu0 0.0
        %1553 = vmatprep.subr.mxu0 0.0
        %1554 = vmatpush1.msra.mxu0 0.0
        %1555 = vmatprep.subr.mxu0 0.0
        %1556 = vmatpush1.msra.mxu0 0.0
        %1557 = vmatprep.subr.mxu0 0.0
        %1558 = vmatpush1.msra.mxu0 0.0
        %1559 = vmatprep.subr.mxu0 0.0
        %1560 = vmatpush1.msra.mxu0 0.0
        %1561 = vmatprep.subr.mxu0 0.0
        %1562 = vmatpush1.msra.mxu0 0.0
        %1563 = vmatprep.subr.mxu0 0.0
        %1564 = vmatpush1.msra.mxu0 0.0
        %1565 = vmatprep.subr.mxu0 0.0
        %1566 = vmatpush1.msra.mxu0 0.0
        %1567 = vmatprep.subr.mxu0 0.0
        %1568 = vmatpush1.msra.mxu0 0.0
        %1569 = vmatprep.subr.mxu0 0.0
        %1570 = vmatpush1.msra.mxu0 0.0
        %1571 = vmatprep.subr.mxu0 0.0
        %v1572 = vand.u32 %v1364, 4294901760
        %v1573 = vsub.f32 %v1364, %v1572
        %1574 = vmatpush1.msra.mxu0 %v1573
        %1575 = vmatprep.subr.mxu0 0.0
        %v1576 = vand.u32 %v1363, 4294901760
        %v1577 = vsub.f32 %v1363, %v1576
        %1578 = vmatpush1.msra.mxu0 %v1577
        %1579 = vmatprep.subr.mxu0 0.0
        %v1580 = vand.u32 %v1362, 4294901760
        %v1581 = vsub.f32 %v1362, %v1580
        %1582 = vmatpush1.msra.mxu0 %v1581
        %1583 = vmatprep.subr.mxu0 0.0
        %1584 = vmatpush2.msra.mxu0 0.0
        %1585 = vmatprep.subr.mxu0 0.0
        %1586 = vmatpush2.msra.mxu0 0.0
        %1587 = vmatprep.subr.mxu0 0.0
        %1588 = vmatpush2.msra.mxu0 0.0
        %1589 = vmatprep.subr.mxu0 0.0
        %1590 = vmatpush2.msra.mxu0 0.0
        %1591 = vmatprep.subr.mxu0 0.0
        %1592 = vmatpush2.msra.mxu0 0.0
        %1593 = vmatprep.subr.mxu0 0.0
        %1594 = vmatpush2.msra.mxu0 0.0
        %1595 = vmatprep.subr.mxu0 0.0
        %1596 = vmatpush2.msra.mxu0 0.0
        %1597 = vmatprep.subr.mxu0 0.0
        %1598 = vmatpush2.msra.mxu0 0.0
        %1599 = vmatprep.subr.mxu0 0.0
        %1600 = vmatpush2.msra.mxu0 0.0
        %1601 = vmatprep.subr.mxu0 0.0
        %1602 = vmatpush2.msra.mxu0 0.0
        %1603 = vmatprep.subr.mxu0 0.0
        %1604 = vmatpush2.msra.mxu0 0.0
        %1605 = vmatprep.subr.mxu0 0.0
        %1606 = vmatpush2.msra.mxu0 0.0
        %1607 = vmatprep.subr.mxu0 0.0
        %1608 = vmatpush2.msra.mxu0 0.0
        %1609 = vmatprep.subr.mxu0 0.0
        %1610 = vmatpush2.msra.mxu0 0.0
        %1611 = vmatprep.subr.mxu0 0.0
        %1612 = vmatpush2.msra.mxu0 0.0
        %1613 = vmatprep.subr.mxu0 0.0
        %1614 = vmatpush2.msra.mxu0 0.0
        %1615 = vmatprep.mubr.f32.mxu0 0.0
        %v1616 = vand.u32 %v269, 4294901760
        %v1617 = vsub.f32 %v269, %v1616
        %1618 = vmatmul.mubr.f32.gmra.mxu0 %v1617
        %v1619 = vpop.f32.mrf.mxu0
        %v1620 = vadd.f32 %v1536, %v1619
        %v1621 = vpop.f32.mrf.mxu0
        %1622 = vmatprep.mubr.f32.mxu0 0.0
        %v1623 = vand.u32 %v272, 4294901760
        %v1624 = vsub.f32 %v272, %v1623
        %1625 = vmatmul.mubr.f32.gmra.mxu0 %v1624
        %v1626 = vpop.f32.mrf.mxu0
        %v1627 = vadd.f32 %v1542, %v1626
        %v1628 = vpop.f32.mrf.mxu0
        %1629 = vdwg.mxu0
        %1630 = vmatprep.subr.mxu0 0.0
        %1631 = vmatpush1.msra.mxu0 0.0
        %1632 = vmatprep.subr.mxu0 0.0
        %1633 = vmatpush1.msra.mxu0 0.0
        %1634 = vmatprep.subr.mxu0 0.0
        %1635 = vmatpush1.msra.mxu0 0.0
        %1636 = vmatprep.subr.mxu0 0.0
        %1637 = vmatpush1.msra.mxu0 0.0
        %1638 = vmatprep.subr.mxu0 0.0
        %1639 = vmatpush1.msra.mxu0 0.0
        %1640 = vmatprep.subr.mxu0 0.0
        %1641 = vmatpush1.msra.mxu0 0.0
        %1642 = vmatprep.subr.mxu0 0.0
        %1643 = vmatpush1.msra.mxu0 0.0
        %1644 = vmatprep.subr.mxu0 0.0
        %1645 = vmatpush1.msra.mxu0 0.0
        %1646 = vmatprep.subr.mxu0 0.0
        %1647 = vmatpush1.msra.mxu0 0.0
        %1648 = vmatprep.subr.mxu0 0.0
        %1649 = vmatpush1.msra.mxu0 0.0
        %1650 = vmatprep.subr.mxu0 0.0
        %1651 = vmatpush1.msra.mxu0 0.0
        %1652 = vmatprep.subr.mxu0 0.0
        %1653 = vmatpush1.msra.mxu0 0.0
        %1654 = vmatprep.subr.mxu0 0.0
        %1655 = vmatpush1.msra.mxu0 0.0
        %1656 = vmatprep.subr.mxu0 0.0
        %v1657 = vand.u32 %v1364, 4294901760
        %1658 = vmatpush1.msra.mxu0 %v1657
        %1659 = vmatprep.subr.mxu0 0.0
        %v1660 = vand.u32 %v1363, 4294901760
        %1661 = vmatpush1.msra.mxu0 %v1660
        %1662 = vmatprep.subr.mxu0 0.0
        %v1663 = vand.u32 %v1362, 4294901760
        %1664 = vmatpush1.msra.mxu0 %v1663
        %1665 = vmatprep.subr.mxu0 0.0
        %1666 = vmatpush2.msra.mxu0 0.0
        %1667 = vmatprep.subr.mxu0 0.0
        %1668 = vmatpush2.msra.mxu0 0.0
        %1669 = vmatprep.subr.mxu0 0.0
        %1670 = vmatpush2.msra.mxu0 0.0
        %1671 = vmatprep.subr.mxu0 0.0
        %1672 = vmatpush2.msra.mxu0 0.0
        %1673 = vmatprep.subr.mxu0 0.0
        %1674 = vmatpush2.msra.mxu0 0.0
        %1675 = vmatprep.subr.mxu0 0.0
        %1676 = vmatpush2.msra.mxu0 0.0
        %1677 = vmatprep.subr.mxu0 0.0
        %1678 = vmatpush2.msra.mxu0 0.0
        %1679 = vmatprep.subr.mxu0 0.0
        %1680 = vmatpush2.msra.mxu0 0.0
        %1681 = vmatprep.subr.mxu0 0.0
        %1682 = vmatpush2.msra.mxu0 0.0
        %1683 = vmatprep.subr.mxu0 0.0
        %1684 = vmatpush2.msra.mxu0 0.0
        %1685 = vmatprep.subr.mxu0 0.0
        %1686 = vmatpush2.msra.mxu0 0.0
        %1687 = vmatprep.subr.mxu0 0.0
        %1688 = vmatpush2.msra.mxu0 0.0
        %1689 = vmatprep.subr.mxu0 0.0
        %1690 = vmatpush2.msra.mxu0 0.0
        %1691 = vmatprep.subr.mxu0 0.0
        %1692 = vmatpush2.msra.mxu0 0.0
        %1693 = vmatprep.subr.mxu0 0.0
        %1694 = vmatpush2.msra.mxu0 0.0
        %1695 = vmatprep.subr.mxu0 0.0
        %1696 = vmatpush2.msra.mxu0 0.0
        %1697 = vmatprep.mubr.f32.mxu0 0.0
        %v1698 = vand.u32 %v269, 4294901760
        %v1699 = vsub.f32 %v269, %v1698
        %v1700 = vand.u32 %v1699, 4294901760
        %1701 = vmatmul.mubr.f32.gmra.mxu0 %v1700
        %v1702 = vpop.f32.mrf.mxu0
        %v1703 = vadd.f32 %v1620, %v1702
        %v1704 = vpop.f32.mrf.mxu0
        %1705 = vmatprep.mubr.f32.mxu0 0.0
        %v1706 = vand.u32 %v272, 4294901760
        %v1707 = vsub.f32 %v272, %v1706
        %v1708 = vand.u32 %v1707, 4294901760
        %1709 = vmatmul.mubr.f32.gmra.mxu0 %v1708
        %v1710 = vpop.f32.mrf.mxu0
        %v1711 = vadd.f32 %v1627, %v1710
        %v1712 = vpop.f32.mrf.mxu0
        %1713 = vdwg.mxu0
        %1714 = vmatprep.subr.mxu0 0.0
        %1715 = vmatpush1.msra.mxu0 0.0
        %1716 = vmatprep.subr.mxu0 0.0
        %1717 = vmatpush1.msra.mxu0 0.0
        %1718 = vmatprep.subr.mxu0 0.0
        %1719 = vmatpush1.msra.mxu0 0.0
        %1720 = vmatprep.subr.mxu0 0.0
        %1721 = vmatpush1.msra.mxu0 0.0
        %1722 = vmatprep.subr.mxu0 0.0
        %1723 = vmatpush1.msra.mxu0 0.0
        %1724 = vmatprep.subr.mxu0 0.0
        %1725 = vmatpush1.msra.mxu0 0.0
        %1726 = vmatprep.subr.mxu0 0.0
        %1727 = vmatpush1.msra.mxu0 0.0
        %1728 = vmatprep.subr.mxu0 0.0
        %1729 = vmatpush1.msra.mxu0 0.0
        %1730 = vmatprep.subr.mxu0 0.0
        %1731 = vmatpush1.msra.mxu0 0.0
        %1732 = vmatprep.subr.mxu0 0.0
        %1733 = vmatpush1.msra.mxu0 0.0
        %1734 = vmatprep.subr.mxu0 0.0
        %1735 = vmatpush1.msra.mxu0 0.0
        %1736 = vmatprep.subr.mxu0 0.0
        %1737 = vmatpush1.msra.mxu0 0.0
        %1738 = vmatprep.subr.mxu0 0.0
        %1739 = vmatpush1.msra.mxu0 0.0
        %1740 = vmatprep.subr.mxu0 0.0
        %v1741 = vand.u32 %v1364, 4294901760
        %v1742 = vsub.f32 %v1364, %v1741
        %v1743 = vand.u32 %v1742, 4294901760
        %1744 = vmatpush1.msra.mxu0 %v1743
        %1745 = vmatprep.subr.mxu0 0.0
        %v1746 = vand.u32 %v1363, 4294901760
        %v1747 = vsub.f32 %v1363, %v1746
        %v1748 = vand.u32 %v1747, 4294901760
        %1749 = vmatpush1.msra.mxu0 %v1748
        %1750 = vmatprep.subr.mxu0 0.0
        %v1751 = vand.u32 %v1362, 4294901760
        %v1752 = vsub.f32 %v1362, %v1751
        %v1753 = vand.u32 %v1752, 4294901760
        %1754 = vmatpush1.msra.mxu0 %v1753
        %1755 = vmatprep.subr.mxu0 0.0
        %1756 = vmatpush2.msra.mxu0 0.0
        %1757 = vmatprep.subr.mxu0 0.0
        %1758 = vmatpush2.msra.mxu0 0.0
        %1759 = vmatprep.subr.mxu0 0.0
        %1760 = vmatpush2.msra.mxu0 0.0
        %1761 = vmatprep.subr.mxu0 0.0
        %1762 = vmatpush2.msra.mxu0 0.0
        %1763 = vmatprep.subr.mxu0 0.0
        %1764 = vmatpush2.msra.mxu0 0.0
        %1765 = vmatprep.subr.mxu0 0.0
        %1766 = vmatpush2.msra.mxu0 0.0
        %1767 = vmatprep.subr.mxu0 0.0
        %1768 = vmatpush2.msra.mxu0 0.0
        %1769 = vmatprep.subr.mxu0 0.0
        %1770 = vmatpush2.msra.mxu0 0.0
        %1771 = vmatprep.subr.mxu0 0.0
        %1772 = vmatpush2.msra.mxu0 0.0
        %1773 = vmatprep.subr.mxu0 0.0
        %1774 = vmatpush2.msra.mxu0 0.0
        %1775 = vmatprep.subr.mxu0 0.0
        %1776 = vmatpush2.msra.mxu0 0.0
        %1777 = vmatprep.subr.mxu0 0.0
        %1778 = vmatpush2.msra.mxu0 0.0
        %1779 = vmatprep.subr.mxu0 0.0
        %1780 = vmatpush2.msra.mxu0 0.0
        %1781 = vmatprep.subr.mxu0 0.0
        %1782 = vmatpush2.msra.mxu0 0.0
        %1783 = vmatprep.subr.mxu0 0.0
        %1784 = vmatpush2.msra.mxu0 0.0
        %1785 = vmatprep.subr.mxu0 0.0
        %1786 = vmatpush2.msra.mxu0 0.0
        %1787 = vmatprep.mubr.f32.mxu0 0.0
        %v1788 = vand.u32 %v269, 4294901760
        %1789 = vmatmul.mubr.f32.gmra.mxu0 %v1788
        %v1790 = vpop.f32.mrf.mxu0
        %v1791 = vadd.f32 %v1703, %v1790
        %v1792 = vpop.f32.mrf.mxu0
        %1793 = vmatprep.mubr.f32.mxu0 0.0
        %v1794 = vand.u32 %v272, 4294901760
        %1795 = vmatmul.mubr.f32.gmra.mxu0 %v1794
        %v1796 = vpop.f32.mrf.mxu0
        %v1797 = vadd.f32 %v1711, %v1796
        %v1798 = vpop.f32.mrf.mxu0
        %1799 = vdwg.mxu0
        %1800 = vmatprep.subr.mxu0 0.0
        %1801 = vmatpush1.msra.mxu0 0.0
        %1802 = vmatprep.subr.mxu0 0.0
        %1803 = vmatpush1.msra.mxu0 0.0
        %1804 = vmatprep.subr.mxu0 0.0
        %1805 = vmatpush1.msra.mxu0 0.0
        %1806 = vmatprep.subr.mxu0 0.0
        %1807 = vmatpush1.msra.mxu0 0.0
        %1808 = vmatprep.subr.mxu0 0.0
        %1809 = vmatpush1.msra.mxu0 0.0
        %1810 = vmatprep.subr.mxu0 0.0
        %1811 = vmatpush1.msra.mxu0 0.0
        %1812 = vmatprep.subr.mxu0 0.0
        %1813 = vmatpush1.msra.mxu0 0.0
        %1814 = vmatprep.subr.mxu0 0.0
        %1815 = vmatpush1.msra.mxu0 0.0
        %1816 = vmatprep.subr.mxu0 0.0
        %1817 = vmatpush1.msra.mxu0 0.0
        %1818 = vmatprep.subr.mxu0 0.0
        %1819 = vmatpush1.msra.mxu0 0.0
        %1820 = vmatprep.subr.mxu0 0.0
        %1821 = vmatpush1.msra.mxu0 0.0
        %1822 = vmatprep.subr.mxu0 0.0
        %1823 = vmatpush1.msra.mxu0 0.0
        %1824 = vmatprep.subr.mxu0 0.0
        %1825 = vmatpush1.msra.mxu0 0.0
        %1826 = vmatprep.subr.mxu0 0.0
        %v1827 = vand.u32 %v1364, 4294901760
        %1828 = vmatpush1.msra.mxu0 %v1827
        %1829 = vmatprep.subr.mxu0 0.0
        %v1830 = vand.u32 %v1363, 4294901760
        %1831 = vmatpush1.msra.mxu0 %v1830
        %1832 = vmatprep.subr.mxu0 0.0
        %v1833 = vand.u32 %v1362, 4294901760
        %1834 = vmatpush1.msra.mxu0 %v1833
        %1835 = vmatprep.subr.mxu0 0.0
        %1836 = vmatpush2.msra.mxu0 0.0
        %1837 = vmatprep.subr.mxu0 0.0
        %1838 = vmatpush2.msra.mxu0 0.0
        %1839 = vmatprep.subr.mxu0 0.0
        %1840 = vmatpush2.msra.mxu0 0.0
        %1841 = vmatprep.subr.mxu0 0.0
        %1842 = vmatpush2.msra.mxu0 0.0
        %1843 = vmatprep.subr.mxu0 0.0
        %1844 = vmatpush2.msra.mxu0 0.0
        %1845 = vmatprep.subr.mxu0 0.0
        %1846 = vmatpush2.msra.mxu0 0.0
        %1847 = vmatprep.subr.mxu0 0.0
        %1848 = vmatpush2.msra.mxu0 0.0
        %1849 = vmatprep.subr.mxu0 0.0
        %1850 = vmatpush2.msra.mxu0 0.0
        %1851 = vmatprep.subr.mxu0 0.0
        %1852 = vmatpush2.msra.mxu0 0.0
        %1853 = vmatprep.subr.mxu0 0.0
        %1854 = vmatpush2.msra.mxu0 0.0
        %1855 = vmatprep.subr.mxu0 0.0
        %1856 = vmatpush2.msra.mxu0 0.0
        %1857 = vmatprep.subr.mxu0 0.0
        %1858 = vmatpush2.msra.mxu0 0.0
        %1859 = vmatprep.subr.mxu0 0.0
        %1860 = vmatpush2.msra.mxu0 0.0
        %1861 = vmatprep.subr.mxu0 0.0
        %1862 = vmatpush2.msra.mxu0 0.0
        %1863 = vmatprep.subr.mxu0 0.0
        %1864 = vmatpush2.msra.mxu0 0.0
        %1865 = vmatprep.subr.mxu0 0.0
        %1866 = vmatpush2.msra.mxu0 0.0
        %1867 = vmatprep.mubr.f32.mxu0 0.0
        %v1868 = vand.u32 %v269, 4294901760
        %1869 = vmatmul.mubr.f32.gmra.mxu0 %v1868
        %v1870 = vpop.f32.mrf.mxu0
        %v1871 = vadd.f32 %v1791, %v1870
        %v1872 = vpop.f32.mrf.mxu0
        %1873 = vmatprep.mubr.f32.mxu0 0.0
        %v1874 = vand.u32 %v272, 4294901760
        %1875 = vmatmul.mubr.f32.gmra.mxu0 %v1874
        %v1876 = vpop.f32.mrf.mxu0
        %v1877 = vadd.f32 %v1797, %v1876
        %v1878 = vpop.f32.mrf.mxu0
        %1879 = vdwg.mxu0
        %1880 = vrot.lane.b32.xlu0 %v1871, 127
        %v1881 = vpop.permute.xlu0 %1880
        %1882 = vrot.lane.b32.xlu0 %v1877, 127
        %v1883 = vpop.permute.xlu0 %1882
        %v1884 = vadd.f32 %v1871, %v1881
        %v1885 = vadd.f32 %v1877, %v1883
        %1886 = vrot.lane.b32.xlu0 %v1884, 126
        %v1887 = vpop.permute.xlu0 %1886
        %1888 = vrot.lane.b32.xlu0 %v1885, 126
        %v1889 = vpop.permute.xlu0 %1888
        %v1890 = vadd.f32 %v1884, %v1887
        %v1891 = vadd.f32 %v1885, %v1889
        %1892 = vrot.lane.b32.xlu0 %v1884, 124
        %v1893 = vpop.permute.xlu0 %1892
        %1894 = vrot.lane.b32.xlu0 %v1885, 124
        %v1895 = vpop.permute.xlu0 %1894
        %v1896 = vadd.f32 %v1890, %v1893
        %v1897 = vadd.f32 %v1891, %v1895
        %1898 = vrot.lane.b32.xlu0 %v1871, 122
        %v1899 = vpop.permute.xlu0 %1898
        %1900 = vrot.lane.b32.xlu0 %v1877, 122
        %v1901 = vpop.permute.xlu0 %1900
        %v1902 = vadd.f32 %v1896, %v1899
        %v1903 = vadd.f32 %v1897, %v1901
        %v1904 = vmul.f32 %v1902, 0.020408163
        %v1905 = vmul.f32 %v1903, 0.020408163
        %v1906 = vmul.f32 %v813, %v813
        %v1907 = vmul.f32 %v814, %v814
        %v1908 = vsub.f32 %v1904, %v1906
        %v1909 = vsub.f32 %v1905, %v1907
        %v1910 = vmul.f32 %v1354, %v1354
        %v1911 = vmul.f32 %v1355, %v1355
        %v1912 = vsub.f32 %v1908, %v1910
        %v1913 = vsub.f32 %v1909, %v1911
        %v1914 = vmul.f32 %v244, %v247
        %v1915 = vmul.f32 %v245, %v248
        %v1916 = vmul.f32 %v246, %v249
        %1917 = vmatprep.subr.mxu0 0.0
        %1918 = vmatpush1.msra.mxu0 0.0
        %1919 = vmatprep.subr.mxu0 0.0
        %1920 = vmatpush1.msra.mxu0 0.0
        %1921 = vmatprep.subr.mxu0 0.0
        %1922 = vmatpush1.msra.mxu0 0.0
        %1923 = vmatprep.subr.mxu0 0.0
        %1924 = vmatpush1.msra.mxu0 0.0
        %1925 = vmatprep.subr.mxu0 0.0
        %1926 = vmatpush1.msra.mxu0 0.0
        %1927 = vmatprep.subr.mxu0 0.0
        %1928 = vmatpush1.msra.mxu0 0.0
        %1929 = vmatprep.subr.mxu0 0.0
        %1930 = vmatpush1.msra.mxu0 0.0
        %1931 = vmatprep.subr.mxu0 0.0
        %1932 = vmatpush1.msra.mxu0 0.0
        %1933 = vmatprep.subr.mxu0 0.0
        %1934 = vmatpush1.msra.mxu0 0.0
        %1935 = vmatprep.subr.mxu0 0.0
        %1936 = vmatpush1.msra.mxu0 0.0
        %1937 = vmatprep.subr.mxu0 0.0
        %1938 = vmatpush1.msra.mxu0 0.0
        %1939 = vmatprep.subr.mxu0 0.0
        %1940 = vmatpush1.msra.mxu0 0.0
        %1941 = vmatprep.subr.mxu0 0.0
        %1942 = vmatpush1.msra.mxu0 0.0
        %1943 = vmatprep.subr.mxu0 0.0
        %v1944 = vand.u32 %v1916, 4294901760
        %1945 = vmatpush1.msra.mxu0 %v1944
        %1946 = vmatprep.subr.mxu0 0.0
        %v1947 = vand.u32 %v1915, 4294901760
        %1948 = vmatpush1.msra.mxu0 %v1947
        %1949 = vmatprep.subr.mxu0 0.0
        %v1950 = vand.u32 %v1914, 4294901760
        %1951 = vmatpush1.msra.mxu0 %v1950
        %1952 = vmatprep.subr.mxu0 0.0
        %1953 = vmatpush2.msra.mxu0 0.0
        %1954 = vmatprep.subr.mxu0 0.0
        %1955 = vmatpush2.msra.mxu0 0.0
        %1956 = vmatprep.subr.mxu0 0.0
        %1957 = vmatpush2.msra.mxu0 0.0
        %1958 = vmatprep.subr.mxu0 0.0
        %1959 = vmatpush2.msra.mxu0 0.0
        %1960 = vmatprep.subr.mxu0 0.0
        %1961 = vmatpush2.msra.mxu0 0.0
        %1962 = vmatprep.subr.mxu0 0.0
        %1963 = vmatpush2.msra.mxu0 0.0
        %1964 = vmatprep.subr.mxu0 0.0
        %1965 = vmatpush2.msra.mxu0 0.0
        %1966 = vmatprep.subr.mxu0 0.0
        %1967 = vmatpush2.msra.mxu0 0.0
        %1968 = vmatprep.subr.mxu0 0.0
        %1969 = vmatpush2.msra.mxu0 0.0
        %1970 = vmatprep.subr.mxu0 0.0
        %1971 = vmatpush2.msra.mxu0 0.0
        %1972 = vmatprep.subr.mxu0 0.0
        %1973 = vmatpush2.msra.mxu0 0.0
        %1974 = vmatprep.subr.mxu0 0.0
        %1975 = vmatpush2.msra.mxu0 0.0
        %1976 = vmatprep.subr.mxu0 0.0
        %1977 = vmatpush2.msra.mxu0 0.0
        %1978 = vmatprep.subr.mxu0 0.0
        %1979 = vmatpush2.msra.mxu0 0.0
        %1980 = vmatprep.subr.mxu0 0.0
        %1981 = vmatpush2.msra.mxu0 0.0
        %1982 = vmatprep.subr.mxu0 0.0
        %1983 = vmatpush2.msra.mxu0 0.0
        %1984 = vmatprep.mubr.f32.mxu0 0.0
        %v1985 = vand.u32 %v269, 4294901760
        %v1986 = vsub.f32 %v269, %v1985
        %v1987 = vand.u32 %v1986, 4294901760
        %v1988 = vsub.f32 %v1986, %v1987
        %v1989 = vand.u32 %v1988, 4294901760
        %1990 = vmatmul.mubr.f32.gmra.mxu0 %v1989
        %v1991 = vpop.f32.mrf.mxu0
        %v1992 = vadd.f32 0.0, %v1991
        %v1993 = vpop.f32.mrf.mxu0
        %1994 = vmatprep.mubr.f32.mxu0 0.0
        %v1995 = vand.u32 %v272, 4294901760
        %v1996 = vsub.f32 %v272, %v1995
        %v1997 = vand.u32 %v1996, 4294901760
        %v1998 = vsub.f32 %v1996, %v1997
        %v1999 = vand.u32 %v1998, 4294901760
        %2000 = vmatmul.mubr.f32.gmra.mxu0 %v1999
        %v2001 = vpop.f32.mrf.mxu0
        %v2002 = vadd.f32 0.0, %v2001
        %v2003 = vpop.f32.mrf.mxu0
        %2004 = vdwg.mxu0
        %2005 = vmatprep.subr.mxu0 0.0
        %2006 = vmatpush1.msra.mxu0 0.0
        %2007 = vmatprep.subr.mxu0 0.0
        %2008 = vmatpush1.msra.mxu0 0.0
        %2009 = vmatprep.subr.mxu0 0.0
        %2010 = vmatpush1.msra.mxu0 0.0
        %2011 = vmatprep.subr.mxu0 0.0
        %2012 = vmatpush1.msra.mxu0 0.0
        %2013 = vmatprep.subr.mxu0 0.0
        %2014 = vmatpush1.msra.mxu0 0.0
        %2015 = vmatprep.subr.mxu0 0.0
        %2016 = vmatpush1.msra.mxu0 0.0
        %2017 = vmatprep.subr.mxu0 0.0
        %2018 = vmatpush1.msra.mxu0 0.0
        %2019 = vmatprep.subr.mxu0 0.0
        %2020 = vmatpush1.msra.mxu0 0.0
        %2021 = vmatprep.subr.mxu0 0.0
        %2022 = vmatpush1.msra.mxu0 0.0
        %2023 = vmatprep.subr.mxu0 0.0
        %2024 = vmatpush1.msra.mxu0 0.0
        %2025 = vmatprep.subr.mxu0 0.0
        %2026 = vmatpush1.msra.mxu0 0.0
        %2027 = vmatprep.subr.mxu0 0.0
        %2028 = vmatpush1.msra.mxu0 0.0
        %2029 = vmatprep.subr.mxu0 0.0
        %2030 = vmatpush1.msra.mxu0 0.0
        %2031 = vmatprep.subr.mxu0 0.0
        %v2032 = vand.u32 %v1916, 4294901760
        %v2033 = vsub.f32 %v1916, %v2032
        %v2034 = vand.u32 %v2033, 4294901760
        %v2035 = vsub.f32 %v2033, %v2034
        %v2036 = vand.u32 %v2035, 4294901760
        %2037 = vmatpush1.msra.mxu0 %v2036
        %2038 = vmatprep.subr.mxu0 0.0
        %v2039 = vand.u32 %v1915, 4294901760
        %v2040 = vsub.f32 %v1915, %v2039
        %v2041 = vand.u32 %v2040, 4294901760
        %v2042 = vsub.f32 %v2040, %v2041
        %v2043 = vand.u32 %v2042, 4294901760
        %2044 = vmatpush1.msra.mxu0 %v2043
        %2045 = vmatprep.subr.mxu0 0.0
        %v2046 = vand.u32 %v1914, 4294901760
        %v2047 = vsub.f32 %v1914, %v2046
        %v2048 = vand.u32 %v2047, 4294901760
        %v2049 = vsub.f32 %v2047, %v2048
        %v2050 = vand.u32 %v2049, 4294901760
        %2051 = vmatpush1.msra.mxu0 %v2050
        %2052 = vmatprep.subr.mxu0 0.0
        %2053 = vmatpush2.msra.mxu0 0.0
        %2054 = vmatprep.subr.mxu0 0.0
        %2055 = vmatpush2.msra.mxu0 0.0
        %2056 = vmatprep.subr.mxu0 0.0
        %2057 = vmatpush2.msra.mxu0 0.0
        %2058 = vmatprep.subr.mxu0 0.0
        %2059 = vmatpush2.msra.mxu0 0.0
        %2060 = vmatprep.subr.mxu0 0.0
        %2061 = vmatpush2.msra.mxu0 0.0
        %2062 = vmatprep.subr.mxu0 0.0
        %2063 = vmatpush2.msra.mxu0 0.0
        %2064 = vmatprep.subr.mxu0 0.0
        %2065 = vmatpush2.msra.mxu0 0.0
        %2066 = vmatprep.subr.mxu0 0.0
        %2067 = vmatpush2.msra.mxu0 0.0
        %2068 = vmatprep.subr.mxu0 0.0
        %2069 = vmatpush2.msra.mxu0 0.0
        %2070 = vmatprep.subr.mxu0 0.0
        %2071 = vmatpush2.msra.mxu0 0.0
        %2072 = vmatprep.subr.mxu0 0.0
        %2073 = vmatpush2.msra.mxu0 0.0
        %2074 = vmatprep.subr.mxu0 0.0
        %2075 = vmatpush2.msra.mxu0 0.0
        %2076 = vmatprep.subr.mxu0 0.0
        %2077 = vmatpush2.msra.mxu0 0.0
        %2078 = vmatprep.subr.mxu0 0.0
        %2079 = vmatpush2.msra.mxu0 0.0
        %2080 = vmatprep.subr.mxu0 0.0
        %2081 = vmatpush2.msra.mxu0 0.0
        %2082 = vmatprep.subr.mxu0 0.0
        %2083 = vmatpush2.msra.mxu0 0.0
        %2084 = vmatprep.mubr.f32.mxu0 0.0
        %v2085 = vand.u32 %v269, 4294901760
        %2086 = vmatmul.mubr.f32.gmra.mxu0 %v2085
        %v2087 = vpop.f32.mrf.mxu0
        %v2088 = vadd.f32 %v1992, %v2087
        %v2089 = vpop.f32.mrf.mxu0
        %2090 = vmatprep.mubr.f32.mxu0 0.0
        %v2091 = vand.u32 %v272, 4294901760
        %2092 = vmatmul.mubr.f32.gmra.mxu0 %v2091
        %v2093 = vpop.f32.mrf.mxu0
        %v2094 = vadd.f32 %v2002, %v2093
        %v2095 = vpop.f32.mrf.mxu0
        %2096 = vdwg.mxu0
        %2097 = vmatprep.subr.mxu0 0.0
        %2098 = vmatpush1.msra.mxu0 0.0
        %2099 = vmatprep.subr.mxu0 0.0
        %2100 = vmatpush1.msra.mxu0 0.0
        %2101 = vmatprep.subr.mxu0 0.0
        %2102 = vmatpush1.msra.mxu0 0.0
        %2103 = vmatprep.subr.mxu0 0.0
        %2104 = vmatpush1.msra.mxu0 0.0
        %2105 = vmatprep.subr.mxu0 0.0
        %2106 = vmatpush1.msra.mxu0 0.0
        %2107 = vmatprep.subr.mxu0 0.0
        %2108 = vmatpush1.msra.mxu0 0.0
        %2109 = vmatprep.subr.mxu0 0.0
        %2110 = vmatpush1.msra.mxu0 0.0
        %2111 = vmatprep.subr.mxu0 0.0
        %2112 = vmatpush1.msra.mxu0 0.0
        %2113 = vmatprep.subr.mxu0 0.0
        %2114 = vmatpush1.msra.mxu0 0.0
        %2115 = vmatprep.subr.mxu0 0.0
        %2116 = vmatpush1.msra.mxu0 0.0
        %2117 = vmatprep.subr.mxu0 0.0
        %2118 = vmatpush1.msra.mxu0 0.0
        %2119 = vmatprep.subr.mxu0 0.0
        %2120 = vmatpush1.msra.mxu0 0.0
        %2121 = vmatprep.subr.mxu0 0.0
        %2122 = vmatpush1.msra.mxu0 0.0
        %2123 = vmatprep.subr.mxu0 0.0
        %v2124 = vand.u32 %v1916, 4294901760
        %v2125 = vsub.f32 %v1916, %v2124
        %2126 = vmatpush1.msra.mxu0 %v2125
        %2127 = vmatprep.subr.mxu0 0.0
        %v2128 = vand.u32 %v1915, 4294901760
        %v2129 = vsub.f32 %v1915, %v2128
        %2130 = vmatpush1.msra.mxu0 %v2129
        %2131 = vmatprep.subr.mxu0 0.0
        %v2132 = vand.u32 %v1914, 4294901760
        %v2133 = vsub.f32 %v1914, %v2132
        %2134 = vmatpush1.msra.mxu0 %v2133
        %2135 = vmatprep.subr.mxu0 0.0
        %2136 = vmatpush2.msra.mxu0 0.0
        %2137 = vmatprep.subr.mxu0 0.0
        %2138 = vmatpush2.msra.mxu0 0.0
        %2139 = vmatprep.subr.mxu0 0.0
        %2140 = vmatpush2.msra.mxu0 0.0
        %2141 = vmatprep.subr.mxu0 0.0
        %2142 = vmatpush2.msra.mxu0 0.0
        %2143 = vmatprep.subr.mxu0 0.0
        %2144 = vmatpush2.msra.mxu0 0.0
        %2145 = vmatprep.subr.mxu0 0.0
        %2146 = vmatpush2.msra.mxu0 0.0
        %2147 = vmatprep.subr.mxu0 0.0
        %2148 = vmatpush2.msra.mxu0 0.0
        %2149 = vmatprep.subr.mxu0 0.0
        %2150 = vmatpush2.msra.mxu0 0.0
        %2151 = vmatprep.subr.mxu0 0.0
        %2152 = vmatpush2.msra.mxu0 0.0
        %2153 = vmatprep.subr.mxu0 0.0
        %2154 = vmatpush2.msra.mxu0 0.0
        %2155 = vmatprep.subr.mxu0 0.0
        %2156 = vmatpush2.msra.mxu0 0.0
        %2157 = vmatprep.subr.mxu0 0.0
        %2158 = vmatpush2.msra.mxu0 0.0
        %2159 = vmatprep.subr.mxu0 0.0
        %2160 = vmatpush2.msra.mxu0 0.0
        %2161 = vmatprep.subr.mxu0 0.0
        %2162 = vmatpush2.msra.mxu0 0.0
        %2163 = vmatprep.subr.mxu0 0.0
        %2164 = vmatpush2.msra.mxu0 0.0
        %2165 = vmatprep.subr.mxu0 0.0
        %2166 = vmatpush2.msra.mxu0 0.0
        %2167 = vmatprep.mubr.f32.mxu0 0.0
        %v2168 = vand.u32 %v269, 4294901760
        %v2169 = vsub.f32 %v269, %v2168
        %2170 = vmatmul.mubr.f32.gmra.mxu0 %v2169
        %v2171 = vpop.f32.mrf.mxu0
        %v2172 = vadd.f32 %v2088, %v2171
        %v2173 = vpop.f32.mrf.mxu0
        %2174 = vmatprep.mubr.f32.mxu0 0.0
        %v2175 = vand.u32 %v272, 4294901760
        %v2176 = vsub.f32 %v272, %v2175
        %2177 = vmatmul.mubr.f32.gmra.mxu0 %v2176
        %v2178 = vpop.f32.mrf.mxu0
        %v2179 = vadd.f32 %v2094, %v2178
        %v2180 = vpop.f32.mrf.mxu0
        %2181 = vdwg.mxu0
        %2182 = vmatprep.subr.mxu0 0.0
        %2183 = vmatpush1.msra.mxu0 0.0
        %2184 = vmatprep.subr.mxu0 0.0
        %2185 = vmatpush1.msra.mxu0 0.0
        %2186 = vmatprep.subr.mxu0 0.0
        %2187 = vmatpush1.msra.mxu0 0.0
        %2188 = vmatprep.subr.mxu0 0.0
        %2189 = vmatpush1.msra.mxu0 0.0
        %2190 = vmatprep.subr.mxu0 0.0
        %2191 = vmatpush1.msra.mxu0 0.0
        %2192 = vmatprep.subr.mxu0 0.0
        %2193 = vmatpush1.msra.mxu0 0.0
        %2194 = vmatprep.subr.mxu0 0.0
        %2195 = vmatpush1.msra.mxu0 0.0
        %2196 = vmatprep.subr.mxu0 0.0
        %2197 = vmatpush1.msra.mxu0 0.0
        %2198 = vmatprep.subr.mxu0 0.0
        %2199 = vmatpush1.msra.mxu0 0.0
        %2200 = vmatprep.subr.mxu0 0.0
        %2201 = vmatpush1.msra.mxu0 0.0
        %2202 = vmatprep.subr.mxu0 0.0
        %2203 = vmatpush1.msra.mxu0 0.0
        %2204 = vmatprep.subr.mxu0 0.0
        %2205 = vmatpush1.msra.mxu0 0.0
        %2206 = vmatprep.subr.mxu0 0.0
        %2207 = vmatpush1.msra.mxu0 0.0
        %2208 = vmatprep.subr.mxu0 0.0
        %v2209 = vand.u32 %v1916, 4294901760
        %2210 = vmatpush1.msra.mxu0 %v2209
        %2211 = vmatprep.subr.mxu0 0.0
        %v2212 = vand.u32 %v1915, 4294901760
        %2213 = vmatpush1.msra.mxu0 %v2212
        %2214 = vmatprep.subr.mxu0 0.0
        %v2215 = vand.u32 %v1914, 4294901760
        %2216 = vmatpush1.msra.mxu0 %v2215
        %2217 = vmatprep.subr.mxu0 0.0
        %2218 = vmatpush2.msra.mxu0 0.0
        %2219 = vmatprep.subr.mxu0 0.0
        %2220 = vmatpush2.msra.mxu0 0.0
        %2221 = vmatprep.subr.mxu0 0.0
        %2222 = vmatpush2.msra.mxu0 0.0
        %2223 = vmatprep.subr.mxu0 0.0
        %2224 = vmatpush2.msra.mxu0 0.0
        %2225 = vmatprep.subr.mxu0 0.0
        %2226 = vmatpush2.msra.mxu0 0.0
        %2227 = vmatprep.subr.mxu0 0.0
        %2228 = vmatpush2.msra.mxu0 0.0
        %2229 = vmatprep.subr.mxu0 0.0
        %2230 = vmatpush2.msra.mxu0 0.0
        %2231 = vmatprep.subr.mxu0 0.0
        %2232 = vmatpush2.msra.mxu0 0.0
        %2233 = vmatprep.subr.mxu0 0.0
        %2234 = vmatpush2.msra.mxu0 0.0
        %2235 = vmatprep.subr.mxu0 0.0
        %2236 = vmatpush2.msra.mxu0 0.0
        %2237 = vmatprep.subr.mxu0 0.0
        %2238 = vmatpush2.msra.mxu0 0.0
        %2239 = vmatprep.subr.mxu0 0.0
        %2240 = vmatpush2.msra.mxu0 0.0
        %2241 = vmatprep.subr.mxu0 0.0
        %2242 = vmatpush2.msra.mxu0 0.0
        %2243 = vmatprep.subr.mxu0 0.0
        %2244 = vmatpush2.msra.mxu0 0.0
        %2245 = vmatprep.subr.mxu0 0.0
        %2246 = vmatpush2.msra.mxu0 0.0
        %2247 = vmatprep.subr.mxu0 0.0
        %2248 = vmatpush2.msra.mxu0 0.0
        %2249 = vmatprep.mubr.f32.mxu0 0.0
        %v2250 = vand.u32 %v269, 4294901760
        %v2251 = vsub.f32 %v269, %v2250
        %v2252 = vand.u32 %v2251, 4294901760
        %2253 = vmatmul.mubr.f32.gmra.mxu0 %v2252
        %v2254 = vpop.f32.mrf.mxu0
        %v2255 = vadd.f32 %v2172, %v2254
        %v2256 = vpop.f32.mrf.mxu0
        %2257 = vmatprep.mubr.f32.mxu0 0.0
        %v2258 = vand.u32 %v272, 4294901760
        %v2259 = vsub.f32 %v272, %v2258
        %v2260 = vand.u32 %v2259, 4294901760
        %2261 = vmatmul.mubr.f32.gmra.mxu0 %v2260
        %v2262 = vpop.f32.mrf.mxu0
        %v2263 = vadd.f32 %v2179, %v2262
        %v2264 = vpop.f32.mrf.mxu0
        %2265 = vdwg.mxu0
        %2266 = vmatprep.subr.mxu0 0.0
        %2267 = vmatpush1.msra.mxu0 0.0
        %2268 = vmatprep.subr.mxu0 0.0
        %2269 = vmatpush1.msra.mxu0 0.0
        %2270 = vmatprep.subr.mxu0 0.0
        %2271 = vmatpush1.msra.mxu0 0.0
        %2272 = vmatprep.subr.mxu0 0.0
        %2273 = vmatpush1.msra.mxu0 0.0
        %2274 = vmatprep.subr.mxu0 0.0
        %2275 = vmatpush1.msra.mxu0 0.0
        %2276 = vmatprep.subr.mxu0 0.0
        %2277 = vmatpush1.msra.mxu0 0.0
        %2278 = vmatprep.subr.mxu0 0.0
        %2279 = vmatpush1.msra.mxu0 0.0
        %2280 = vmatprep.subr.mxu0 0.0
        %2281 = vmatpush1.msra.mxu0 0.0
        %2282 = vmatprep.subr.mxu0 0.0
        %2283 = vmatpush1.msra.mxu0 0.0
        %2284 = vmatprep.subr.mxu0 0.0
        %2285 = vmatpush1.msra.mxu0 0.0
        %2286 = vmatprep.subr.mxu0 0.0
        %2287 = vmatpush1.msra.mxu0 0.0
        %2288 = vmatprep.subr.mxu0 0.0
        %2289 = vmatpush1.msra.mxu0 0.0
        %2290 = vmatprep.subr.mxu0 0.0
        %2291 = vmatpush1.msra.mxu0 0.0
        %2292 = vmatprep.subr.mxu0 0.0
        %v2293 = vand.u32 %v1916, 4294901760
        %v2294 = vsub.f32 %v1916, %v2293
        %v2295 = vand.u32 %v2294, 4294901760
        %2296 = vmatpush1.msra.mxu0 %v2295
        %2297 = vmatprep.subr.mxu0 0.0
        %v2298 = vand.u32 %v1915, 4294901760
        %v2299 = vsub.f32 %v1915, %v2298
        %v2300 = vand.u32 %v2299, 4294901760
        %2301 = vmatpush1.msra.mxu0 %v2300
        %2302 = vmatprep.subr.mxu0 0.0
        %v2303 = vand.u32 %v1914, 4294901760
        %v2304 = vsub.f32 %v1914, %v2303
        %v2305 = vand.u32 %v2304, 4294901760
        %2306 = vmatpush1.msra.mxu0 %v2305
        %2307 = vmatprep.subr.mxu0 0.0
        %2308 = vmatpush2.msra.mxu0 0.0
        %2309 = vmatprep.subr.mxu0 0.0
        %2310 = vmatpush2.msra.mxu0 0.0
        %2311 = vmatprep.subr.mxu0 0.0
        %2312 = vmatpush2.msra.mxu0 0.0
        %2313 = vmatprep.subr.mxu0 0.0
        %2314 = vmatpush2.msra.mxu0 0.0
        %2315 = vmatprep.subr.mxu0 0.0
        %2316 = vmatpush2.msra.mxu0 0.0
        %2317 = vmatprep.subr.mxu0 0.0
        %2318 = vmatpush2.msra.mxu0 0.0
        %2319 = vmatprep.subr.mxu0 0.0
        %2320 = vmatpush2.msra.mxu0 0.0
        %2321 = vmatprep.subr.mxu0 0.0
        %2322 = vmatpush2.msra.mxu0 0.0
        %2323 = vmatprep.subr.mxu0 0.0
        %2324 = vmatpush2.msra.mxu0 0.0
        %2325 = vmatprep.subr.mxu0 0.0
        %2326 = vmatpush2.msra.mxu0 0.0
        %2327 = vmatprep.subr.mxu0 0.0
        %2328 = vmatpush2.msra.mxu0 0.0
        %2329 = vmatprep.subr.mxu0 0.0
        %2330 = vmatpush2.msra.mxu0 0.0
        %2331 = vmatprep.subr.mxu0 0.0
        %2332 = vmatpush2.msra.mxu0 0.0
        %2333 = vmatprep.subr.mxu0 0.0
        %2334 = vmatpush2.msra.mxu0 0.0
        %2335 = vmatprep.subr.mxu0 0.0
        %2336 = vmatpush2.msra.mxu0 0.0
        %2337 = vmatprep.subr.mxu0 0.0
        %2338 = vmatpush2.msra.mxu0 0.0
        %2339 = vmatprep.mubr.f32.mxu0 0.0
        %v2340 = vand.u32 %v269, 4294901760
        %2341 = vmatmul.mubr.f32.gmra.mxu0 %v2340
        %v2342 = vpop.f32.mrf.mxu0
        %v2343 = vadd.f32 %v2255, %v2342
        %v2344 = vpop.f32.mrf.mxu0
        %2345 = vmatprep.mubr.f32.mxu0 0.0
        %v2346 = vand.u32 %v272, 4294901760
        %2347 = vmatmul.mubr.f32.gmra.mxu0 %v2346
        %v2348 = vpop.f32.mrf.mxu0
        %v2349 = vadd.f32 %v2263, %v2348
        %v2350 = vpop.f32.mrf.mxu0
        %2351 = vdwg.mxu0
        %2352 = vmatprep.subr.mxu0 0.0
        %2353 = vmatpush1.msra.mxu0 0.0
        %2354 = vmatprep.subr.mxu0 0.0
        %2355 = vmatpush1.msra.mxu0 0.0
        %2356 = vmatprep.subr.mxu0 0.0
        %2357 = vmatpush1.msra.mxu0 0.0
        %2358 = vmatprep.subr.mxu0 0.0
        %2359 = vmatpush1.msra.mxu0 0.0
        %2360 = vmatprep.subr.mxu0 0.0
        %2361 = vmatpush1.msra.mxu0 0.0
        %2362 = vmatprep.subr.mxu0 0.0
        %2363 = vmatpush1.msra.mxu0 0.0
        %2364 = vmatprep.subr.mxu0 0.0
        %2365 = vmatpush1.msra.mxu0 0.0
        %2366 = vmatprep.subr.mxu0 0.0
        %2367 = vmatpush1.msra.mxu0 0.0
        %2368 = vmatprep.subr.mxu0 0.0
        %2369 = vmatpush1.msra.mxu0 0.0
        %2370 = vmatprep.subr.mxu0 0.0
        %2371 = vmatpush1.msra.mxu0 0.0
        %2372 = vmatprep.subr.mxu0 0.0
        %2373 = vmatpush1.msra.mxu0 0.0
        %2374 = vmatprep.subr.mxu0 0.0
        %2375 = vmatpush1.msra.mxu0 0.0
        %2376 = vmatprep.subr.mxu0 0.0
        %2377 = vmatpush1.msra.mxu0 0.0
        %2378 = vmatprep.subr.mxu0 0.0
        %v2379 = vand.u32 %v1916, 4294901760
        %2380 = vmatpush1.msra.mxu0 %v2379
        %2381 = vmatprep.subr.mxu0 0.0
        %v2382 = vand.u32 %v1915, 4294901760
        %2383 = vmatpush1.msra.mxu0 %v2382
        %2384 = vmatprep.subr.mxu0 0.0
        %v2385 = vand.u32 %v1914, 4294901760
        %2386 = vmatpush1.msra.mxu0 %v2385
        %2387 = vmatprep.subr.mxu0 0.0
        %2388 = vmatpush2.msra.mxu0 0.0
        %2389 = vmatprep.subr.mxu0 0.0
        %2390 = vmatpush2.msra.mxu0 0.0
        %2391 = vmatprep.subr.mxu0 0.0
        %2392 = vmatpush2.msra.mxu0 0.0
        %2393 = vmatprep.subr.mxu0 0.0
        %2394 = vmatpush2.msra.mxu0 0.0
        %2395 = vmatprep.subr.mxu0 0.0
        %2396 = vmatpush2.msra.mxu0 0.0
        %2397 = vmatprep.subr.mxu0 0.0
        %2398 = vmatpush2.msra.mxu0 0.0
        %2399 = vmatprep.subr.mxu0 0.0
        %2400 = vmatpush2.msra.mxu0 0.0
        %2401 = vmatprep.subr.mxu0 0.0
        %2402 = vmatpush2.msra.mxu0 0.0
        %2403 = vmatprep.subr.mxu0 0.0
        %2404 = vmatpush2.msra.mxu0 0.0
        %2405 = vmatprep.subr.mxu0 0.0
        %2406 = vmatpush2.msra.mxu0 0.0
        %2407 = vmatprep.subr.mxu0 0.0
        %2408 = vmatpush2.msra.mxu0 0.0
        %2409 = vmatprep.subr.mxu0 0.0
        %2410 = vmatpush2.msra.mxu0 0.0
        %2411 = vmatprep.subr.mxu0 0.0
        %2412 = vmatpush2.msra.mxu0 0.0
        %2413 = vmatprep.subr.mxu0 0.0
        %2414 = vmatpush2.msra.mxu0 0.0
        %2415 = vmatprep.subr.mxu0 0.0
        %2416 = vmatpush2.msra.mxu0 0.0
        %2417 = vmatprep.subr.mxu0 0.0
        %2418 = vmatpush2.msra.mxu0 0.0
        %2419 = vmatprep.mubr.f32.mxu0 0.0
        %v2420 = vand.u32 %v269, 4294901760
        %2421 = vmatmul.mubr.f32.gmra.mxu0 %v2420
        %v2422 = vpop.f32.mrf.mxu0
        %v2423 = vadd.f32 %v2343, %v2422
        %v2424 = vpop.f32.mrf.mxu0
        %2425 = vmatprep.mubr.f32.mxu0 0.0
        %v2426 = vand.u32 %v272, 4294901760
        %2427 = vmatmul.mubr.f32.gmra.mxu0 %v2426
        %v2428 = vpop.f32.mrf.mxu0
        %v2429 = vadd.f32 %v2349, %v2428
        %v2430 = vpop.f32.mrf.mxu0
        %2431 = vdwg.mxu0
        %2432 = vrot.lane.b32.xlu0 %v2423, 127
        %v2433 = vpop.permute.xlu0 %2432
        %2434 = vrot.lane.b32.xlu0 %v2429, 127
        %v2435 = vpop.permute.xlu0 %2434
        %v2436 = vadd.f32 %v2423, %v2433
        %v2437 = vadd.f32 %v2429, %v2435
        %2438 = vrot.lane.b32.xlu0 %v2436, 126
        %v2439 = vpop.permute.xlu0 %2438
        %2440 = vrot.lane.b32.xlu0 %v2437, 126
        %v2441 = vpop.permute.xlu0 %2440
        %v2442 = vadd.f32 %v2436, %v2439
        %v2443 = vadd.f32 %v2437, %v2441
        %2444 = vrot.lane.b32.xlu0 %v2436, 124
        %v2445 = vpop.permute.xlu0 %2444
        %2446 = vrot.lane.b32.xlu0 %v2437, 124
        %v2447 = vpop.permute.xlu0 %2446
        %v2448 = vadd.f32 %v2442, %v2445
        %v2449 = vadd.f32 %v2443, %v2447
        %2450 = vrot.lane.b32.xlu0 %v2423, 122
        %v2451 = vpop.permute.xlu0 %2450
        %2452 = vrot.lane.b32.xlu0 %v2429, 122
        %v2453 = vpop.permute.xlu0 %2452
        %v2454 = vadd.f32 %v2448, %v2451
        %v2455 = vadd.f32 %v2449, %v2453
        %v2456 = vmul.f32 %v2454, 0.020408163
        %v2457 = vmul.f32 %v2455, 0.020408163
        %v2458 = vmul.f32 %v813, %v1354
        %v2459 = vmul.f32 %v814, %v1355
        %v2460 = vsub.f32 %v2456, %v2458
        %v2461 = vsub.f32 %v2457, %v2459
        %v2462 = vmul.f32 %v813, 2.0
        %v2463 = vmul.f32 %v814, 2.0
        %v2464 = vmul.f32 %v2462, %v1354
        %v2465 = vmul.f32 %v2463, %v1355
        %v2466 = vadd.f32 %v2464, 0.0001
        %v2467 = vadd.f32 %v2465, 0.0001
        %v2468 = vmul.f32 %v2460, 2.0
        %v2469 = vmul.f32 %v2461, 2.0
        %v2470 = vadd.f32 %v2468, 0.0009
        %v2471 = vadd.f32 %v2469, 0.0009
        %v2472 = vmul.f32 %v2466, %v2470
        %v2473 = vmul.f32 %v2467, %v2471
        %v2474 = vadd.f32 %v1906, %v1910
        %v2475 = vadd.f32 %v1907, %v1911
        %v2476 = vadd.f32 %v2474, 0.0001
        %v2477 = vadd.f32 %v2475, 0.0001
        %v2478 = vadd.f32 %v1912, 0.0009
        %v2479 = vadd.f32 %v1913, 0.0009
        %v2480 = vmul.f32 %v2476, %v2478
        %v2481 = vmul.f32 %v2477, %v2479
        %v2482 = vrcp.pop %v2480
        %v2483 = vmul.f32 %v2472, %v2482
        %v2484 = vrcp.pop %v2481
        %v2485 = vmul.f32 %v2473, %v2484
        %v2486 = vsub.f32 1.0, %v2483
        %v2487 = vsub.f32 1.0, %v2485
        %v2488 = vmul.f32 %v2486, 0.5
        %v2489 = vmul.f32 %v2487, 0.5
        %v2490 = vmax.f32 %v2488, 0.0
        %v2491 = vmax.f32 %v2489, 0.0
        %v2492 = vmin.f32 %v2490, 1.0
        %v2493 = vmin.f32 %v2491, 1.0
        %2494 = vst [vmem:[%s243] sm:$0xff] %v2492
        %2495 = vst [vmem:[%s243 + $0x8] sm:$0xff] %v2493
        %s2496 = sand.u32 %s73, 1
        %s2497 = sand.u32 %s73, 1
        %s2498 = smul.addr %s2497, 16
        %s2499 = scalar_lea.vmem [#allocation4], %s2498
        // Predicated region
        $region105: #{ssim_pallas.1} parent=95 // pred_check
          %p2500 = pneg %p83
        $region106: #{ssim_pallas.1} parent=95 // pred_check_branch
          %2502 = sbr.rel (%p2500) target = $region108
        $region107: #{ssim_pallas.1} parent=95 // pred_region
          %s2503 = smul.addr %s13, 8
          %s2504 = scalar_lea.vmem %s2, %s2503
          // Predicated region
          $region109: #{ssim_pallas.1} parent=107 // pred_check
            _
          $region110: #{ssim_pallas.1} parent=107 // pred_check_branch
            %2506 = sbr.rel (0) target = $region112
          $region111: #{ssim_pallas.1} parent=107 // pred_region
            // Predicated region
            $region113: #{ssim_pallas.1} parent=111 // pred_check
              _
            $region114: #{ssim_pallas.1} parent=111 // pred_check_branch
              %2508 = sbr.rel (0) target = $region116
            $region115: #{ssim_pallas.1} parent=111 // pred_region
              // Predicated region
              $region128: #{ssim_pallas.1} parent=115 // pred_check
                _
              $region129: #{ssim_pallas.1} parent=115 // pred_check_branch
                %2526 = sbr.rel (0) target = $region131
              $region130: #{ssim_pallas.1} parent=115 // pred_region
                loop: start=0, step=1, limit=1
                $region132: #{ssim_pallas.1} parent=130 // loop_pre_header
                  _
                $region133: #{ssim_pallas.1} parent=130 // loop_header
                  %s2528 = sphi 0, %s2532
                  %p2529 = scmp.ge.s32.totalorder %s2528, 1
                  %s2533 = sphi %s2499, %s2499
                  %s2534 = sphi %s2504, %s2504
                $region134: #{ssim_pallas.1} parent=130 // loop_header_branch
                  %2531 = sbr.rel (%p2529) target = $region138
                $region135: #{ssim_pallas.1} parent=130 // loop_body
                  %v2535 = vld [vmem:[%s2533] sm:$0xff]
                  %2536 = vst [vmem:[%s2534] sm:$0xff] %v2535
                  %v2537 = vld [vmem:[%s2533 + $0x8] sm:$0xff]
                  %2538 = vst [vmem:[%s2534 + $0x10] sm:$0xff] %v2537
                $region136: #{ssim_pallas.1} parent=130 // loop_footer
                  %s2532 = sadd.s32 1, %s2528
                $region137: #{ssim_pallas.1} parent=130 // loop_footer_branch
                  %2527 = sbr.rel target = $region133
                $region138: #{ssim_pallas.1} parent=130 // loop_exit
                  _
              $region131: #{ssim_pallas.1} parent=115 // pred_fallthru
                _
              // Predicated region
              $region139: #{ssim_pallas.1} parent=115 // pred_check
                _
              $region140: #{ssim_pallas.1} parent=115 // pred_check_branch
                %2540 = sbr.rel target = $region142
              $region141: #{ssim_pallas.1} parent=115 // pred_region
                _
              $region142: #{ssim_pallas.1} parent=115 // pred_fallthru
                _
            $region116: #{ssim_pallas.1} parent=111 // pred_fallthru
              _
            // Predicated region
            $region117: #{ssim_pallas.1} parent=111 // pred_check
              _
            $region118: #{ssim_pallas.1} parent=111 // pred_check_branch
              %2510 = sbr.rel target = $region120
            $region119: #{ssim_pallas.1} parent=111 // pred_region
              %s2512 = ssub.s32 256, 1
              loop: start=0, step=1, limit=1
              $region121: #{ssim_pallas.1} parent=119 // loop_pre_header
                _
              $region122: #{ssim_pallas.1} parent=119 // loop_header
                %s2514 = sphi 0, %s2518
                %p2515 = scmp.ge.s32.totalorder %s2514, 1
                %s2519 = sphi %s2499, %s2499
                %s2520 = sphi %s2504, %s2504
              $region123: #{ssim_pallas.1} parent=119 // loop_header_branch
                %2517 = sbr.rel (%p2515) target = $region127
              $region124: #{ssim_pallas.1} parent=119 // loop_body
                %v2521 = vld [vmem:[%s2519] sm:%s2512]
                %2522 = vst [vmem:[%s2520] sm:%s2512] %v2521
                %v2523 = vld [vmem:[%s2519 + $0x8] sm:%s2512]
                %2524 = vst [vmem:[%s2520 + $0x10] sm:%s2512] %v2523
              $region125: #{ssim_pallas.1} parent=119 // loop_footer
                %s2518 = sadd.s32 1, %s2514
              $region126: #{ssim_pallas.1} parent=119 // loop_footer_branch
                %2513 = sbr.rel target = $region122
              $region127: #{ssim_pallas.1} parent=119 // loop_exit
                _
            $region120: #{ssim_pallas.1} parent=111 // pred_fallthru
              _
          $region112: #{ssim_pallas.1} parent=107 // pred_fallthru
            _
          %2541 = vnop
        $region108: #{ssim_pallas.1} parent=95 // pred_fallthru
          _
      $region96: #{ssim_pallas.1} parent=5 // pred_fallthru
        _
      %p2542 = scmp.le.s32.totalorder 2, %s8
      // Predicated region
      $region143: #{ssim_pallas.1} parent=5 // pred_check
        %p2543 = pneg %p2542
      $region144: #{ssim_pallas.1} parent=5 // pred_check_branch
        %2545 = sbr.rel (%p2543) target = $region146
      $region145: #{ssim_pallas.1} parent=5 // pred_region
        %s2546 = ssub.s32 %s8, 2
        // Predicated region
        $region147: #{ssim_pallas.1} parent=145 // pred_check
          %p2547 = pneg %p89
        $region148: #{ssim_pallas.1} parent=145 // pred_check_branch
          %2549 = sbr.rel (%p2547) target = $region150
        $region149: #{ssim_pallas.1} parent=145 // pred_region
          %s2550 = sand.u32 %s74, 1
          %s2551 = sand.u32 %s74, 1
          %s2552 = smul.addr %s2551, 16
          %s2553 = scalar_lea.vmem [#allocation4], %s2552
        $region150: #{ssim_pallas.1} parent=145 // pred_fallthru
          _
      $region146: #{ssim_pallas.1} parent=5 // pred_fallthru
        _
    $region6: #{ssim_pallas.1} parent=1 // loop_footer
      %s12 = sadd.s32 1, %s8
    $region7: #{ssim_pallas.1} parent=1 // loop_footer_branch
      %7 = sbr.rel target = $region3
    $region8: #{ssim_pallas.1} parent=1 // loop_exit
      _

</llo_original>
